<compile_context>
chip_gen: v6e
topology: v6e:2x2x1
jax: 0.10.0
libtpu: 0.0.40
codegen_flags: <defaults>
</compile_context>

<pallas_src>
import functools

import jax
import jax.numpy as jnp
from jax import lax
from jax.experimental import pallas as pl
from jax.experimental.pallas import tpu as pltpu

LANE = 128  # lane width: last dim of every operand is padded to a multiple of this


def _round_up(n, m):
    return ((n + m - 1) // m) * m


# ----------------------------- Pallas kernel --------------------------------
def _basenet_fused_kernel(*refs, layer_meta):
    """Whole BaseNet forward in one kernel (all hops, intermediates stay in VMEM).

    refs = (x, [src_col, dst_row, w_cat, bias] * num_layers, out)
    layer_meta[i] = (n_src_pad, n_dst_pad, n_edge_pad)  -- static padded sizes.
    Padded edges carry index -1 and therefore match nothing in the one-hots.
    """
    x_ref, o_ref = refs[0], refs[-1]
    layer_refs = refs[1:-1]
    num_layers = len(layer_meta)

    h_bf = x_ref[...]                                   # bf16 [n_src_p0, f_p] activations
    out = None
    for i, (n_src_p, n_dst_p, n_edge_p) in enumerate(layer_meta):
        src_ref, dst_ref, w_ref, b_ref = layer_refs[4 * i: 4 * i + 4]

        # ---- in-kernel sparse mean aggregation via one-hot MXU matmuls -----
        src_col = src_ref[...]                          # [E_p, 1]  int32 (-1 = pad)
        dst_row = dst_ref[...]                          # [1, E_p]  int32 (-1 = pad)
        oh_src = jnp.where(                             # oh[e, s] = (src[e] == s), f32
            lax.broadcasted_iota(jnp.int32, (n_edge_p, n_src_p), 1) == src_col,
            1.0, 0.0)
        oh_dst = jnp.where(                             # oh[d, e] = (dst[e] == d), f32
            lax.broadcasted_iota(jnp.int32, (n_dst_p, n_edge_p), 0) == dst_row,
            1.0, 0.0)

        gathered = jnp.dot(oh_src.astype(jnp.bfloat16), h_bf,          # [E_p, f_p] f32
                           preferred_element_type=jnp.float32)
        agg_sum = jnp.dot(oh_dst.astype(jnp.bfloat16),                  # [D_p, f_p] f32
                          gathered.astype(jnp.bfloat16),
                          preferred_element_type=jnp.float32)
        deg = jnp.sum(oh_dst, axis=1, keepdims=True)                    # [D_p, 1] f32
        inv_deg = pl.reciprocal(jnp.maximum(deg, 1.0), approx=True)     # EUP slot
        agg = agg_sum * inv_deg                                         # mean (empty -> 0)

        # ---- fused weight matmul: single MXU pass with K = 2 * f_in_pad ----
        x_tgt = h_bf[:n_dst_p, :]                       # x_target = x[:size[1]] (padded)
        x_cat = jnp.concatenate([x_tgt, agg.astype(jnp.bfloat16)], axis=-1)
        out = jnp.dot(x_cat, w_ref[...], preferred_element_type=jnp.float32)
        out = out + b_ref[...]                          # bias + ReLU in f32 (v5e-safe)
        if i != num_layers - 1:
            out = jnp.maximum(out, 0.0)                 # dropout(p=0) is the identity
        h_bf = out.astype(jnp.bfloat16)                 # bf16-resident between hops

    o_ref[...] = out.astype(o_ref.dtype)


# ------------------------------ parameters -----------------------------------
def glorot(key, shape):
    fan_in, fan_out = shape
    limit = (6.0 / (fan_in + fan_out)) ** 0.5
    return jax.random.uniform(key, shape, jnp.float32, -limit, limit)


def init_basenet_params(key, num_features, hidden_layer, out_layer, num_layers):
    """Deterministic parameter init matching BaseNet.__init__ layer sizing."""
    dims = [num_features] + [hidden_layer] * (num_layers - 1) + [out_layer]
    params = []
    for i in range(num_layers):
        key, k1, k2 = jax.random.split(key, 3)
        params.append(dict(
            w_neigh=glorot(k1, (dims[i], dims[i + 1])),
            w_self=glorot(k2, (dims[i], dims[i + 1])),
            bias=jnp.zeros((dims[i + 1],), jnp.float32),
        ))
    return params


def pack_params(params):
    """Pad weights to lane-dense 128-wide tiles, fuse [W_self; W_neigh], cast to bf16.

    Done once (outside the per-call path)."""
    packed = []
    for p in params:
        f_in, f_out = p["w_self"].shape
        f_in_p, f_out_p = _round_up(f_in, LANE), _round_up(f_out, LANE)
        ws = jnp.zeros((f_in_p, f_out_p), jnp.float32).at[:f_in, :f_out].set(p["w_self"])
        wn = jnp.zeros((f_in_p, f_out_p), jnp.float32).at[:f_in, :f_out].set(p["w_neigh"])
        w_cat = jnp.concatenate([ws, wn], axis=0).astype(jnp.bfloat16)  # rows: [self; neigh]
        bias = jnp.zeros((1, f_out_p), jnp.float32).at[0, :f_out].set(p["bias"])
        packed.append(dict(w_cat=w_cat, bias=bias,
                           f_in=f_in, f_out=f_out, f_in_p=f_in_p, f_out_p=f_out_p))
    return packed


# ------------------------------ forward (JAX glue) ----------------------------
def basenet_forward(packed, x, adjs):
    """BaseNet.forward: all sampled hops fused into a single pallas_call."""
    num_layers = len(packed)
    assert len(adjs) == num_layers

    n_src0 = x.shape[0]
    n_src_p = _round_up(n_src0, LANE)
    f0, f0_p = packed[0]["f_in"], packed[0]["f_in_p"]
    x_p = jnp.zeros((n_src_p, f0_p), jnp.bfloat16).at[:n_src0, :f0].set(
        x.astype(jnp.bfloat16))

    operands = [x_p]
    layer_meta = []
    flops = 0
    bytes_accessed = x_p.size * 2
    cur_src_p = n_src_p
    for i, (edge_index, _, size) in enumerate(adjs):
        _, n_dst = size
        n_edges = edge_index.shape[1]
        e_p = _round_up(n_edges, LANE)
        d_p = _round_up(n_dst, LANE)
        src = jnp.pad(edge_index[0].astype(jnp.int32), (0, e_p - n_edges),
                      constant_values=-1).reshape(e_p, 1)
        dst = jnp.pad(edge_index[1].astype(jnp.int32), (0, e_p - n_edges),
                      constant_values=-1).reshape(1, e_p)
        p = packed[i]
        operands += [src, dst, p["w_cat"], p["bias"]]
        layer_meta.append((cur_src_p, d_p, e_p))
        f_in_p, f_out_p = p["f_in_p"], p["f_out_p"]
        flops += 2 * (e_p * cur_src_p * f_in_p          # gather matmul
                      + d_p * e_p * f_in_p              # scatter-sum matmul
                      + d_p * 2 * f_in_p * f_out_p)     # fused weight matmul
        bytes_accessed += (src.size * 4 + dst.size * 4
                           + p["w_cat"].size * 2 + p["bias"].size * 4)
        cur_src_p = d_p

    d_last_p = layer_meta[-1][1]
    f_last, f_last_p = packed[-1]["f_out"], packed[-1]["f_out_p"]
    bytes_accessed += d_last_p * f_last_p * 4

    vmem = pl.BlockSpec(memory_space=pltpu.MemorySpace.VMEM)
    out_p = pl.pallas_call(
        functools.partial(_basenet_fused_kernel, layer_meta=tuple(layer_meta)),
        out_shape=jax.ShapeDtypeStruct((d_last_p, f_last_p), jnp.float32),
        in_specs=[vmem] * len(operands),
        out_specs=vmem,
        cost_estimate=pl.CostEstimate(flops=int(flops), transcendentals=0,
                                      bytes_accessed=int(bytes_accessed)),
    )(*operands)

    n_dst_last = adjs[-1][2][1]
    return out_p[:n_dst_last, :f_last]


def basenet_forward_ref(params, x, adjs):
    """Pure-JAX f32 reference (dense mean adjacency) for correctness checking."""
    num_layers = len(params)
    for i, (edge_index, _, size) in enumerate(adjs):
        n_src, n_dst = size
        src, dst = edge_index[0], edge_index[1]
        a = jnp.zeros((n_dst, n_src), jnp.float32).at[dst, src].add(1.0)
        deg = jnp.maximum(a.sum(axis=1, keepdims=True), 1.0)
        agg = (a / deg) @ x
        x = x[:n_dst] @ params[i]["w_self"] + agg @ params[i]["w_neigh"] + params[i]["bias"]
        if i != num_layers - 1:
            x = jax.nn.relu(x)
    return x


# ------------------------------- demo ----------------------------------------
if __name__ == "__main__":
    key = jax.random.PRNGKey(0)

    # Small, BaseNet-consistent sizes.
    num_features, hidden_layer, out_layer, num_layers = 16, 32, 128, 2
    n_src0, n_dst0, n_dst1 = 40, 24, 8          # NeighborSampler-style hop sizes
    e0, e1 = 96, 48                             # edges per sampled block

    key, kx, ke0s, ke0d, ke1s, ke1d, kp = jax.random.split(key, 7)
    x = jax.random.normal(kx, (n_src0, num_features), jnp.float32)

    # adjs: list of (edge_index [2, E] rows (src, dst), e_id, size (n_src, n_dst))
    ei0 = jnp.stack([jax.random.randint(ke0s, (e0,), 0, n_src0),
                     jax.random.randint(ke0d, (e0,), 0, n_dst0)])
    ei1 = jnp.stack([jax.random.randint(ke1s, (e1,), 0, n_dst0),
                     jax.random.randint(ke1d, (e1,), 0, n_dst1)])
    adjs = [(ei0, None, (n_src0, n_dst0)), (ei1, None, (n_dst0, n_dst1))]

    params = init_basenet_params(kp, num_features, hidden_layer, out_layer, num_layers)
    packed = pack_params(params)

    out = basenet_forward(packed, x, adjs)
    out = jax.block_until_ready(out)
    assert out.shape == (n_dst1, out_layer), out.shape

    ref = basenet_forward_ref(params, x, adjs)
    assert jnp.allclose(out, ref, atol=1e-1, rtol=1e-1), float(jnp.max(jnp.abs(out - ref)))

    # TODO(synk): abstract loss()/inference() (training objective, full-graph path)
    # have no forward-kernel equivalent and are not implemented here.
    print("KERNEL_OK")
</pallas_src>

<mosaic_0001>
module attributes {stable_mosaic.version = 11 : i64} {
  func.func @_basenet_fused_kernel(%arg0: memref<128x128xbf16, #tpu.memory_space<vmem>>, %arg1: memref<128x1xi32, #tpu.memory_space<vmem>>, %arg2: memref<1x128xi32, #tpu.memory_space<vmem>>, %arg3: memref<256x128xbf16, #tpu.memory_space<vmem>>, %arg4: memref<1x128xf32, #tpu.memory_space<vmem>>, %arg5: memref<128x1xi32, #tpu.memory_space<vmem>>, %arg6: memref<1x128xi32, #tpu.memory_space<vmem>>, %arg7: memref<256x128xbf16, #tpu.memory_space<vmem>>, %arg8: memref<1x128xf32, #tpu.memory_space<vmem>>, %arg9: memref<128x128xf32, #tpu.memory_space<vmem>>) attributes {dimension_semantics = [], scalar_prefetch = 0 : i64, scratch_operands = 0 : i64, tpu.core_type = #tpu.core_type<tc>} {
    %c0 = arith.constant 0 : index
    %c0_0 = arith.constant 0 : index
    %0 = vector.load %arg0[%c0, %c0_0] : memref<128x128xbf16, #tpu.memory_space<vmem>>, vector<128x128xbf16>
    %c0_1 = arith.constant 0 : index
    %c0_2 = arith.constant 0 : index
    %1 = vector.load %arg1[%c0_1, %c0_2] : memref<128x1xi32, #tpu.memory_space<vmem>>, vector<128x1xi32>
    %c0_3 = arith.constant 0 : index
    %c0_4 = arith.constant 0 : index
    %2 = vector.load %arg2[%c0_3, %c0_4] : memref<1x128xi32, #tpu.memory_space<vmem>>, vector<1x128xi32>
    %3 = tpu.iota {dimensions = array<i32: 1>} : vector<128x128xi32>
    %4 = vector.broadcast %1 : vector<128x1xi32> to vector<128x128xi32>
    %5 = arith.cmpi eq, %3, %4 : vector<128x128xi32>
    %cst = arith.constant 1.000000e+00 : f32
    %cst_5 = arith.constant 0.000000e+00 : f32
    %6 = vector.broadcast %cst : f32 to vector<128x128xf32>
    %7 = vector.broadcast %cst_5 : f32 to vector<128x128xf32>
    %8 = arith.select %5, %6, %7 : vector<128x128xi1>, vector<128x128xf32>
    %9 = tpu.iota {dimensions = array<i32: 0>} : vector<128x128xi32>
    %10 = vector.broadcast %2 : vector<1x128xi32> to vector<128x128xi32>
    %11 = arith.cmpi eq, %9, %10 : vector<128x128xi32>
    %cst_6 = arith.constant 1.000000e+00 : f32
    %cst_7 = arith.constant 0.000000e+00 : f32
    %12 = vector.broadcast %cst_6 : f32 to vector<128x128xf32>
    %13 = vector.broadcast %cst_7 : f32 to vector<128x128xf32>
    %14 = arith.select %11, %12, %13 : vector<128x128xi1>, vector<128x128xf32>
    %15 = arith.truncf %8 : vector<128x128xf32> to vector<128x128xbf16>
    %cst_8 = arith.constant dense<0.000000e+00> : vector<128x128xf32>
    %16 = tpu.matmul %15, %0, %cst_8 {dimension_numbers = #tpu.dot_dimension_numbers<[1], [0], [0], [1], [0, 0, 1, 1], [], []>} : vector<128x128xbf16>, vector<128x128xbf16>, vector<128x128xf32> -> vector<128x128xf32>
    %17 = arith.truncf %14 : vector<128x128xf32> to vector<128x128xbf16>
    %18 = arith.truncf %16 : vector<128x128xf32> to vector<128x128xbf16>
    %cst_9 = arith.constant dense<0.000000e+00> : vector<128x128xf32>
    %19 = tpu.matmul %17, %18, %cst_9 {dimension_numbers = #tpu.dot_dimension_numbers<[1], [0], [0], [1], [0, 0, 1, 1], [], []>} : vector<128x128xbf16>, vector<128x128xbf16>, vector<128x128xf32> -> vector<128x128xf32>
    %cst_10 = arith.constant dense<0.000000e+00> : vector<128xf32>
    %20 = vector.multi_reduction <add>, %14, %cst_10 [1] : vector<128x128xf32> to vector<128xf32>
    %21 = vector.shape_cast %20 : vector<128xf32> to vector<128x1xf32>
    %cst_11 = arith.constant 1.000000e+00 : f32
    %22 = vector.broadcast %cst_11 : f32 to vector<128x1xf32>
    %23 = arith.maximumf %21, %22 : vector<128x1xf32>
    %24 = tpu.reciprocal %23 {approx = true} : vector<128x1xf32> -> vector<128x1xf32>
    %25 = vector.broadcast %24 : vector<128x1xf32> to vector<128x128xf32>
    %26 = arith.mulf %19, %25 : vector<128x128xf32>
    %27 = arith.truncf %26 : vector<128x128xf32> to vector<128x128xbf16>
    %28 = tpu.concatenate %0, %27 in 1 : vector<128x128xbf16>, vector<128x128xbf16> -> vector<128x256xbf16>
    %c0_12 = arith.constant 0 : index
    %c0_13 = arith.constant 0 : index
    %29 = vector.load %arg3[%c0_12, %c0_13] : memref<256x128xbf16, #tpu.memory_space<vmem>>, vector<256x128xbf16>
    %cst_14 = arith.constant dense<0.000000e+00> : vector<128x128xf32>
    %30 = tpu.matmul %28, %29, %cst_14 {dimension_numbers = #tpu.dot_dimension_numbers<[1], [0], [0], [1], [0, 0, 1, 1], [], []>} : vector<128x256xbf16>, vector<256x128xbf16>, vector<128x128xf32> -> vector<128x128xf32>
    %c0_15 = arith.constant 0 : index
    %c0_16 = arith.constant 0 : index
    %31 = vector.load %arg4[%c0_15, %c0_16] : memref<1x128xf32, #tpu.memory_space<vmem>>, vector<1x128xf32>
    %32 = vector.broadcast %31 : vector<1x128xf32> to vector<128x128xf32>
    %33 = arith.addf %30, %32 : vector<128x128xf32>
    %cst_17 = arith.constant 0.000000e+00 : f32
    %34 = vector.broadcast %cst_17 : f32 to vector<128x128xf32>
    %35 = arith.maximumf %33, %34 : vector<128x128xf32>
    %36 = arith.truncf %35 : vector<128x128xf32> to vector<128x128xbf16>
    %c0_18 = arith.constant 0 : index
    %c0_19 = arith.constant 0 : index
    %37 = vector.load %arg5[%c0_18, %c0_19] : memref<128x1xi32, #tpu.memory_space<vmem>>, vector<128x1xi32>
    %c0_20 = arith.constant 0 : index
    %c0_21 = arith.constant 0 : index
    %38 = vector.load %arg6[%c0_20, %c0_21] : memref<1x128xi32, #tpu.memory_space<vmem>>, vector<1x128xi32>
    %39 = tpu.iota {dimensions = array<i32: 1>} : vector<128x128xi32>
    %40 = vector.broadcast %37 : vector<128x1xi32> to vector<128x128xi32>
    %41 = arith.cmpi eq, %39, %40 : vector<128x128xi32>
    %cst_22 = arith.constant 1.000000e+00 : f32
    %cst_23 = arith.constant 0.000000e+00 : f32
    %42 = vector.broadcast %cst_22 : f32 to vector<128x128xf32>
    %43 = vector.broadcast %cst_23 : f32 to vector<128x128xf32>
    %44 = arith.select %41, %42, %43 : vector<128x128xi1>, vector<128x128xf32>
    %45 = tpu.iota {dimensions = array<i32: 0>} : vector<128x128xi32>
    %46 = vector.broadcast %38 : vector<1x128xi32> to vector<128x128xi32>
    %47 = arith.cmpi eq, %45, %46 : vector<128x128xi32>
    %cst_24 = arith.constant 1.000000e+00 : f32
    %cst_25 = arith.constant 0.000000e+00 : f32
    %48 = vector.broadcast %cst_24 : f32 to vector<128x128xf32>
    %49 = vector.broadcast %cst_25 : f32 to vector<128x128xf32>
    %50 = arith.select %47, %48, %49 : vector<128x128xi1>, vector<128x128xf32>
    %51 = arith.truncf %44 : vector<128x128xf32> to vector<128x128xbf16>
    %cst_26 = arith.constant dense<0.000000e+00> : vector<128x128xf32>
    %52 = tpu.matmul %51, %36, %cst_26 {dimension_numbers = #tpu.dot_dimension_numbers<[1], [0], [0], [1], [0, 0, 1, 1], [], []>} : vector<128x128xbf16>, vector<128x128xbf16>, vector<128x128xf32> -> vector<128x128xf32>
    %53 = arith.truncf %50 : vector<128x128xf32> to vector<128x128xbf16>
    %54 = arith.truncf %52 : vector<128x128xf32> to vector<128x128xbf16>
    %cst_27 = arith.constant dense<0.000000e+00> : vector<128x128xf32>
    %55 = tpu.matmul %53, %54, %cst_27 {dimension_numbers = #tpu.dot_dimension_numbers<[1], [0], [0], [1], [0, 0, 1, 1], [], []>} : vector<128x128xbf16>, vector<128x128xbf16>, vector<128x128xf32> -> vector<128x128xf32>
    %cst_28 = arith.constant dense<0.000000e+00> : vector<128xf32>
    %56 = vector.multi_reduction <add>, %50, %cst_28 [1] : vector<128x128xf32> to vector<128xf32>
    %57 = vector.shape_cast %56 : vector<128xf32> to vector<128x1xf32>
    %cst_29 = arith.constant 1.000000e+00 : f32
    %58 = vector.broadcast %cst_29 : f32 to vector<128x1xf32>
    %59 = arith.maximumf %57, %58 : vector<128x1xf32>
    %60 = tpu.reciprocal %59 {approx = true} : vector<128x1xf32> -> vector<128x1xf32>
    %61 = vector.broadcast %60 : vector<128x1xf32> to vector<128x128xf32>
    %62 = arith.mulf %55, %61 : vector<128x128xf32>
    %63 = arith.truncf %62 : vector<128x128xf32> to vector<128x128xbf16>
    %64 = tpu.concatenate %36, %63 in 1 : vector<128x128xbf16>, vector<128x128xbf16> -> vector<128x256xbf16>
    %c0_30 = arith.constant 0 : index
    %c0_31 = arith.constant 0 : index
    %65 = vector.load %arg7[%c0_30, %c0_31] : memref<256x128xbf16, #tpu.memory_space<vmem>>, vector<256x128xbf16>
    %cst_32 = arith.constant dense<0.000000e+00> : vector<128x128xf32>
    %66 = tpu.matmul %64, %65, %cst_32 {dimension_numbers = #tpu.dot_dimension_numbers<[1], [0], [0], [1], [0, 0, 1, 1], [], []>} : vector<128x256xbf16>, vector<256x128xbf16>, vector<128x128xf32> -> vector<128x128xf32>
    %c0_33 = arith.constant 0 : index
    %c0_34 = arith.constant 0 : index
    %67 = vector.load %arg8[%c0_33, %c0_34] : memref<1x128xf32, #tpu.memory_space<vmem>>, vector<1x128xf32>
    %68 = vector.broadcast %67 : vector<1x128xf32> to vector<128x128xf32>
    %69 = arith.addf %66, %68 : vector<128x128xf32>
    %c0_35 = arith.constant 0 : index
    %c0_36 = arith.constant 0 : index
    %70 = vector.load %arg9[%c0_35, %c0_36] : memref<128x128xf32, #tpu.memory_space<vmem>>, vector<128x128xf32>
    tpu.vector_store %arg9[%c0_35, %c0_36], %69 {strides = array<i32>} : memref<128x128xf32, #tpu.memory_space<vmem>>, vector<128x128xf32>,
    return
  }
}

</mosaic_0001>

<llo_original>
// kernel: tpu_custom_call.1
$region0: #{tpu_custom_call.1}
  #allocation0 [shape = 'u32[]', space=smem, size = 0x4, offset = 0x4, fixed_abs, tag = 'smem constant byte address 0x4 - core index']
  #allocation1 [shape = 'u32[144,128]{1,0:T(1,128)}', space=vmem, size = 0x12000, scoped, tag = 'internal scratch']
  %s0 = inlined_call_operand.hbm [shape: bf16[128,128], index: 0, kind: input, shape index: {}]
  %s1 = inlined_call_operand.vmem [shape: s32[128,1], index: 1, kind: input, shape index: {}]
  %s2 = inlined_call_operand.vmem [shape: s32[1,128], index: 2, kind: input, shape index: {}]
  %s3 = inlined_call_operand.vmem [shape: bf16[256,128], index: 3, kind: input, shape index: {}]
  %s4 = inlined_call_operand.vmem [shape: f32[1,128], index: 4, kind: input, shape index: {}]
  %s5 = inlined_call_operand.vmem [shape: s32[128,1], index: 5, kind: input, shape index: {}]
  %s6 = inlined_call_operand.vmem [shape: s32[1,128], index: 6, kind: input, shape index: {}]
  %s7 = inlined_call_operand.vmem [shape: bf16[256,128], index: 7, kind: input, shape index: {}]
  %s8 = inlined_call_operand.vmem [shape: f32[1,128], index: 8, kind: input, shape index: {}]
  %s9 = inlined_call_operand.hbm [shape: f32[128,128], index: 9, kind: output, shape index: {}]
  %s10 = sld [smem:[#allocation0]]
  $region50: #{tpu_custom_call.1} parent=0
    _
  %s12 = ssub.s32 1, %s10
  %s13 = scalar_select 0, %s12, %s10
  $region1: #{tpu_custom_call.1} parent=0
    #allocation2 [shape = 'u8[32768]{0}', space=vmem, size = 0x8000, scoped, tag = 'input window, operand 0, single buffered']
    #allocation3 [shape = 's32[1]{0}', space=sflag, size = 0x4, scoped, tag = 'scoped memory for tpu_custom_call.1']
    #allocation4 [shape = 's32[1]{0}', space=sflag, size = 0x4, scoped, tag = 'scoped memory for tpu_custom_call.1']
    #allocation5 [shape = 'u8[65536]{0}', space=vmem, size = 0x10000, scoped, tag = 'output window, operand 0, single buffered']
    %14 = vsyncpa [#allocation3], 0
    %15 = vsyncpa [#allocation4], 0
    // Predicated region
    $region2: #{tpu_custom_call.1} parent=1 // pred_check
      _
    $region3: #{tpu_custom_call.1} parent=1 // pred_check_branch
      %17 = sbr.rel (0) target = $region5
    $region4: #{tpu_custom_call.1} parent=1 // pred_region
      %s19 = ssub.s32 1024, 1024
      %20 = vsyncadd [#allocation3], %s19
      %s21 = sshll.u32 [#allocation2], 4
      %s22 = int_to_ptr.vmem [resolvable:$true] %s21
      %27 = dma.hbm_to_vmem [thread:$0]  %s0, 1024, %s22, [#allocation3], 64, 64, 4
    $region5: #{tpu_custom_call.1} parent=1 // pred_fallthru
      _
    // Predicated region
    $region6: #{tpu_custom_call.1} parent=1 // pred_check
      _
    $region7: #{tpu_custom_call.1} parent=1 // pred_check_branch
      %29 = sbr.rel (0) target = $region9
    $region8: #{tpu_custom_call.1} parent=1 // pred_region
      _
    $region9: #{tpu_custom_call.1} parent=1 // pred_fallthru
      _
    // Predicated region
    $region10: #{tpu_custom_call.1} parent=1 // pred_check
      _
    $region11: #{tpu_custom_call.1} parent=1 // pred_check_branch
      %31 = sbr.rel (0) target = $region13
    $region12: #{tpu_custom_call.1} parent=1 // pred_region
      _
    $region13: #{tpu_custom_call.1} parent=1 // pred_fallthru
      _
    // Predicated region
    $region14: #{tpu_custom_call.1} parent=1 // pred_check
      _
    $region15: #{tpu_custom_call.1} parent=1 // pred_check_branch
      %33 = sbr.rel (0) target = $region17
    $region16: #{tpu_custom_call.1} parent=1 // pred_region
      _
    $region17: #{tpu_custom_call.1} parent=1 // pred_fallthru
      _
    // Predicated region
    $region18: #{tpu_custom_call.1} parent=1 // pred_check
      _
    $region19: #{tpu_custom_call.1} parent=1 // pred_check_branch
      %35 = sbr.rel (0) target = $region21
    $region20: #{tpu_custom_call.1} parent=1 // pred_region
      _
    $region21: #{tpu_custom_call.1} parent=1 // pred_fallthru
      _
    // Predicated region
    $region22: #{tpu_custom_call.1} parent=1 // pred_check
      _
    $region23: #{tpu_custom_call.1} parent=1 // pred_check_branch
      %37 = sbr.rel (0) target = $region25
    $region24: #{tpu_custom_call.1} parent=1 // pred_region
      _
    $region25: #{tpu_custom_call.1} parent=1 // pred_fallthru
      _
    // Predicated region
    $region26: #{tpu_custom_call.1} parent=1 // pred_check
      _
    $region27: #{tpu_custom_call.1} parent=1 // pred_check_branch
      %39 = sbr.rel (0) target = $region29
    $region28: #{tpu_custom_call.1} parent=1 // pred_region
      _
    $region29: #{tpu_custom_call.1} parent=1 // pred_fallthru
      _
    // Predicated region
    $region30: #{tpu_custom_call.1} parent=1 // pred_check
      _
    $region31: #{tpu_custom_call.1} parent=1 // pred_check_branch
      %41 = sbr.rel (0) target = $region33
    $region32: #{tpu_custom_call.1} parent=1 // pred_region
      _
    $region33: #{tpu_custom_call.1} parent=1 // pred_fallthru
      _
    // Predicated region
    $region34: #{tpu_custom_call.1} parent=1 // pred_check
      _
    $region35: #{tpu_custom_call.1} parent=1 // pred_check_branch
      %43 = sbr.rel (0) target = $region37
    $region36: #{tpu_custom_call.1} parent=1 // pred_region
      _
    $region37: #{tpu_custom_call.1} parent=1 // pred_fallthru
      _
    // Predicated region
    $region38: #{tpu_custom_call.1} parent=1 // pred_check
      _
    $region39: #{tpu_custom_call.1} parent=1 // pred_check_branch
      %45 = sbr.rel (0) target = $region41
    $region40: #{tpu_custom_call.1} parent=1 // pred_region
      %46 = dma.done [#allocation3], 1024
    $region41: #{tpu_custom_call.1} parent=1 // pred_fallthru
      _
    %v48 = vld [vmem:[#allocation2] sm:$0xf]
    %v49 = vld [vmem:[#allocation2 + $0x4] sm:$0xf]
    %v50 = vld [vmem:[#allocation2 + $0x8] sm:$0xf]
    %v51 = vld [vmem:[#allocation2 + $0xc] sm:$0xf]
    %v52 = vld [vmem:[#allocation2 + $0x10] sm:$0xf]
    %v53 = vld [vmem:[#allocation2 + $0x14] sm:$0xf]
    %v54 = vld [vmem:[#allocation2 + $0x18] sm:$0xf]
    %v55 = vld [vmem:[#allocation2 + $0x1c] sm:$0xf]
    %v56 = vld [vmem:[#allocation2 + $0x20] sm:$0xf]
    %v57 = vld [vmem:[#allocation2 + $0x24] sm:$0xf]
    %v58 = vld [vmem:[#allocation2 + $0x28] sm:$0xf]
    %v59 = vld [vmem:[#allocation2 + $0x2c] sm:$0xf]
    %v60 = vld [vmem:[#allocation2 + $0x30] sm:$0xf]
    %v61 = vld [vmem:[#allocation2 + $0x34] sm:$0xf]
    %v62 = vld [vmem:[#allocation2 + $0x38] sm:$0xf]
    %v63 = vld [vmem:[#allocation2 + $0x3c] sm:$0xf]
    %v64 = vld [vmem:[%s1] sm:$0xff]
    %v65 = vld [vmem:[%s1 + $0x8] sm:$0xff]
    %v66 = vld [vmem:[%s1 + $0x10] sm:$0xff]
    %v67 = vld [vmem:[%s1 + $0x18] sm:$0xff]
    %v68 = vld [vmem:[%s1 + $0x20] sm:$0xff]
    %v69 = vld [vmem:[%s1 + $0x28] sm:$0xff]
    %v70 = vld [vmem:[%s1 + $0x30] sm:$0xff]
    %v71 = vld [vmem:[%s1 + $0x38] sm:$0xff]
    %v72 = vld [vmem:[%s1 + $0x40] sm:$0xff]
    %v73 = vld [vmem:[%s1 + $0x48] sm:$0xff]
    %v74 = vld [vmem:[%s1 + $0x50] sm:$0xff]
    %v75 = vld [vmem:[%s1 + $0x58] sm:$0xff]
    %v76 = vld [vmem:[%s1 + $0x60] sm:$0xff]
    %v77 = vld [vmem:[%s1 + $0x68] sm:$0xff]
    %v78 = vld [vmem:[%s1 + $0x70] sm:$0xff]
    %v79 = vld [vmem:[%s1 + $0x78] sm:$0xff]
    %v80 = vld [vmem:[%s2] sm:$0x1]
    %v81 = vlaneseq
    %v82 = vand.u32 %v81, 127
    %83 = vset.pattern.permute.xlu0 0
    %84 = vperm.xlu0 %83, %v64
    %v85 = vpop.permute.xlu0 %84
    %86 = vset.pattern.permute.xlu0 0
    %87 = vperm.xlu0 %86, %v65
    %v88 = vpop.permute.xlu0 %87
    %89 = vset.pattern.permute.xlu0 0
    %90 = vperm.xlu0 %89, %v66
    %v91 = vpop.permute.xlu0 %90
    %92 = vset.pattern.permute.xlu0 0
    %93 = vperm.xlu0 %92, %v67
    %v94 = vpop.permute.xlu0 %93
    %95 = vset.pattern.permute.xlu0 0
    %96 = vperm.xlu0 %95, %v68
    %v97 = vpop.permute.xlu0 %96
    %98 = vset.pattern.permute.xlu0 0
    %99 = vperm.xlu0 %98, %v69
    %v100 = vpop.permute.xlu0 %99
    %101 = vset.pattern.permute.xlu0 0
    %102 = vperm.xlu0 %101, %v70
    %v103 = vpop.permute.xlu0 %102
    %104 = vset.pattern.permute.xlu0 0
    %105 = vperm.xlu0 %104, %v71
    %v106 = vpop.permute.xlu0 %105
    %107 = vset.pattern.permute.xlu0 0
    %108 = vperm.xlu0 %107, %v72
    %v109 = vpop.permute.xlu0 %108
    %110 = vset.pattern.permute.xlu0 0
    %111 = vperm.xlu0 %110, %v73
    %v112 = vpop.permute.xlu0 %111
    %113 = vset.pattern.permute.xlu0 0
    %114 = vperm.xlu0 %113, %v74
    %v115 = vpop.permute.xlu0 %114
    %116 = vset.pattern.permute.xlu0 0
    %117 = vperm.xlu0 %116, %v75
    %v118 = vpop.permute.xlu0 %117
    %119 = vset.pattern.permute.xlu0 0
    %120 = vperm.xlu0 %119, %v76
    %v121 = vpop.permute.xlu0 %120
    %122 = vset.pattern.permute.xlu0 0
    %123 = vperm.xlu0 %122, %v77
    %v124 = vpop.permute.xlu0 %123
    %125 = vset.pattern.permute.xlu0 0
    %126 = vperm.xlu0 %125, %v78
    %v127 = vpop.permute.xlu0 %126
    %128 = vset.pattern.permute.xlu0 0
    %129 = vperm.xlu0 %128, %v79
    %v130 = vpop.permute.xlu0 %129
    %vm131 = vcmp.eq.s32.totalorder %v82, %v85
    %vm132 = vcmp.eq.s32.totalorder %v82, %v88
    %vm133 = vcmp.eq.s32.totalorder %v82, %v91
    %vm134 = vcmp.eq.s32.totalorder %v82, %v94
    %vm135 = vcmp.eq.s32.totalorder %v82, %v97
    %vm136 = vcmp.eq.s32.totalorder %v82, %v100
    %vm137 = vcmp.eq.s32.totalorder %v82, %v103
    %vm138 = vcmp.eq.s32.totalorder %v82, %v106
    %vm139 = vcmp.eq.s32.totalorder %v82, %v109
    %vm140 = vcmp.eq.s32.totalorder %v82, %v112
    %vm141 = vcmp.eq.s32.totalorder %v82, %v115
    %vm142 = vcmp.eq.s32.totalorder %v82, %v118
    %vm143 = vcmp.eq.s32.totalorder %v82, %v121
    %vm144 = vcmp.eq.s32.totalorder %v82, %v124
    %vm145 = vcmp.eq.s32.totalorder %v82, %v127
    %vm146 = vcmp.eq.s32.totalorder %v82, %v130
    %v147 = vsel %vm131, 1.0, 0.0
    %v148 = vsel %vm132, 1.0, 0.0
    %v149 = vsel %vm133, 1.0, 0.0
    %v150 = vsel %vm134, 1.0, 0.0
    %v151 = vsel %vm135, 1.0, 0.0
    %v152 = vsel %vm136, 1.0, 0.0
    %v153 = vsel %vm137, 1.0, 0.0
    %v154 = vsel %vm138, 1.0, 0.0
    %v155 = vsel %vm139, 1.0, 0.0
    %v156 = vsel %vm140, 1.0, 0.0
    %v157 = vsel %vm141, 1.0, 0.0
    %v158 = vsel %vm142, 1.0, 0.0
    %v159 = vsel %vm143, 1.0, 0.0
    %v160 = vsel %vm144, 1.0, 0.0
    %v161 = vsel %vm145, 1.0, 0.0
    %v162 = vsel %vm146, 1.0, 0.0
    %v163 = vlaneseq
    %v164 = vshrl.u32 %v163, 7
    %v165 = vadd.s32 %v164, 8
    %v166 = vadd.s32 %v164, 16
    %v167 = vadd.s32 %v164, 24
    %v168 = vadd.s32 %v164, 32
    %v169 = vadd.s32 %v164, 40
    %v170 = vadd.s32 %v164, 48
    %v171 = vadd.s32 %v164, 56
    %v172 = vadd.s32 %v164, 64
    %v173 = vadd.s32 %v164, 72
    %v174 = vadd.s32 %v164, 80
    %v175 = vadd.s32 %v164, 88
    %v176 = vadd.s32 %v164, 96
    %v177 = vadd.s32 %v164, 104
    %v178 = vadd.s32 %v164, 112
    %v179 = vadd.s32 %v164, 120
    %v180 = vlaneseq
    %v181 = vshrl.u32 %v180, 7
    %v182 = vsub.s32 0, %v181
    %v183 = vrot.slane %v80, %v182
    %vm184 = vcmp.eq.s32.totalorder %v164, %v183
    %vm185 = vcmp.eq.s32.totalorder %v165, %v183
    %vm186 = vcmp.eq.s32.totalorder %v166, %v183
    %vm187 = vcmp.eq.s32.totalorder %v167, %v183
    %vm188 = vcmp.eq.s32.totalorder %v168, %v183
    %vm189 = vcmp.eq.s32.totalorder %v169, %v183
    %vm190 = vcmp.eq.s32.totalorder %v170, %v183
    %vm191 = vcmp.eq.s32.totalorder %v171, %v183
    %vm192 = vcmp.eq.s32.totalorder %v172, %v183
    %vm193 = vcmp.eq.s32.totalorder %v173, %v183
    %vm194 = vcmp.eq.s32.totalorder %v174, %v183
    %vm195 = vcmp.eq.s32.totalorder %v175, %v183
    %vm196 = vcmp.eq.s32.totalorder %v176, %v183
    %vm197 = vcmp.eq.s32.totalorder %v177, %v183
    %vm198 = vcmp.eq.s32.totalorder %v178, %v183
    %vm199 = vcmp.eq.s32.totalorder %v179, %v183
    %v200 = vsel %vm184, 1.0, 0.0
    %v201 = vsel %vm185, 1.0, 0.0
    %v202 = vsel %vm186, 1.0, 0.0
    %v203 = vsel %vm187, 1.0, 0.0
    %v204 = vsel %vm188, 1.0, 0.0
    %v205 = vsel %vm189, 1.0, 0.0
    %v206 = vsel %vm190, 1.0, 0.0
    %v207 = vsel %vm191, 1.0, 0.0
    %v208 = vsel %vm192, 1.0, 0.0
    %v209 = vsel %vm193, 1.0, 0.0
    %v210 = vsel %vm194, 1.0, 0.0
    %v211 = vsel %vm195, 1.0, 0.0
    %v212 = vsel %vm196, 1.0, 0.0
    %v213 = vsel %vm197, 1.0, 0.0
    %v214 = vsel %vm198, 1.0, 0.0
    %v215 = vsel %vm199, 1.0, 0.0
    %v216 = vpack.c.bf16 %v148, %v147
    %v217 = vpack.c.bf16 %v150, %v149
    %v218 = vpack.c.bf16 %v152, %v151
    %v219 = vpack.c.bf16 %v154, %v153
    %v220 = vpack.c.bf16 %v156, %v155
    %v221 = vpack.c.bf16 %v158, %v157
    %v222 = vpack.c.bf16 %v160, %v159
    %v223 = vpack.c.bf16 %v162, %v161
    %v240 = vunpack.c.l.b16 %v48
    %v241 = vunpack.c.l.b16 %v49
    %v242 = vunpack.c.l.b16 %v50
    %v243 = vunpack.c.l.b16 %v51
    %v244 = vunpack.c.l.b16 %v52
    %v245 = vunpack.c.l.b16 %v53
    %v246 = vunpack.c.l.b16 %v54
    %v247 = vunpack.c.l.b16 %v55
    %v248 = vunpack.c.l.b16 %v56
    %v249 = vunpack.c.l.b16 %v57
    %v250 = vunpack.c.l.b16 %v58
    %v251 = vunpack.c.l.b16 %v59
    %v252 = vunpack.c.l.b16 %v60
    %v253 = vunpack.c.l.b16 %v61
    %v254 = vunpack.c.l.b16 %v62
    %v255 = vunpack.c.l.b16 %v63
    %v256 = vpack.c.b16 %v241, %v240
    %v257 = vpack.c.b16 %v243, %v242
    %v258 = vpack.c.b16 %v245, %v244
    %v259 = vpack.c.b16 %v247, %v246
    %v260 = vpack.c.b16 %v249, %v248
    %v261 = vpack.c.b16 %v251, %v250
    %v262 = vpack.c.b16 %v253, %v252
    %v263 = vpack.c.b16 %v255, %v254
    %272 = vmatprep.subr.bf16.mxu0 0
    %273 = vmatpush1.bf16.msra.mxu0 %v263
    %274 = vmatprep.subr.bf16.mxu0 0
    %275 = vmatpush1.bf16.msra.mxu0 %v262
    %276 = vmatprep.subr.bf16.mxu0 0
    %277 = vmatpush1.bf16.msra.mxu0 %v261
    %278 = vmatprep.subr.bf16.mxu0 0
    %279 = vmatpush1.bf16.msra.mxu0 %v260
    %280 = vmatprep.subr.bf16.mxu0 0
    %281 = vmatpush1.bf16.msra.mxu0 %v259
    %282 = vmatprep.subr.bf16.mxu0 0
    %283 = vmatpush1.bf16.msra.mxu0 %v258
    %284 = vmatprep.subr.bf16.mxu0 0
    %285 = vmatpush1.bf16.msra.mxu0 %v257
    %286 = vmatprep.subr.bf16.mxu0 0
    %287 = vmatpush1.bf16.msra.mxu0 %v256
    %288 = vmatprep.subr.bf16.mxu0 0
    %289 = vmatpush2.bf16.msra.mxu0 0
    %290 = vmatprep.subr.bf16.mxu0 0
    %291 = vmatpush2.bf16.msra.mxu0 0
    %292 = vmatprep.subr.bf16.mxu0 0
    %293 = vmatpush2.bf16.msra.mxu0 0
    %294 = vmatprep.subr.bf16.mxu0 0
    %295 = vmatpush2.bf16.msra.mxu0 0
    %296 = vmatprep.subr.bf16.mxu0 0
    %297 = vmatpush2.bf16.msra.mxu0 0
    %298 = vmatprep.subr.bf16.mxu0 0
    %299 = vmatpush2.bf16.msra.mxu0 0
    %300 = vmatprep.subr.bf16.mxu0 0
    %301 = vmatpush2.bf16.msra.mxu0 0
    %302 = vmatprep.subr.bf16.mxu0 0
    %303 = vmatpush2.bf16.msra.mxu0 0
    %304 = vmatprep.mubr.bf16.mxu0 0
    %305 = vmatmul.mubr.bf16.gmra.mxu0 %v216
    %v306 = vpop.f32.mrf.mxu0
    %v307 = vadd.f32 0.0, %v306
    %v308 = vpop.f32.mrf.mxu0
    %v309 = vpop.f32.mrf.mxu0
    %v310 = vadd.f32 0.0, %v309
    %v311 = vpop.f32.mrf.mxu0
    %312 = vmatprep.mubr.bf16.mxu0 0
    %313 = vmatmul.mubr.bf16.gmra.mxu0 %v217
    %v314 = vpop.f32.mrf.mxu0
    %v315 = vadd.f32 0.0, %v314
    %v316 = vpop.f32.mrf.mxu0
    %v317 = vpop.f32.mrf.mxu0
    %v318 = vadd.f32 0.0, %v317
    %v319 = vpop.f32.mrf.mxu0
    %320 = vmatprep.mubr.bf16.mxu0 0
    %321 = vmatmul.mubr.bf16.gmra.mxu0 %v218
    %v322 = vpop.f32.mrf.mxu0
    %v323 = vadd.f32 0.0, %v322
    %v324 = vpop.f32.mrf.mxu0
    %v325 = vpop.f32.mrf.mxu0
    %v326 = vadd.f32 0.0, %v325
    %v327 = vpop.f32.mrf.mxu0
    %328 = vmatprep.mubr.bf16.mxu0 0
    %329 = vmatmul.mubr.bf16.gmra.mxu0 %v219
    %v330 = vpop.f32.mrf.mxu0
    %v331 = vadd.f32 0.0, %v330
    %v332 = vpop.f32.mrf.mxu0
    %v333 = vpop.f32.mrf.mxu0
    %v334 = vadd.f32 0.0, %v333
    %v335 = vpop.f32.mrf.mxu0
    %336 = vmatprep.mubr.bf16.mxu0 0
    %337 = vmatmul.mubr.bf16.gmra.mxu0 %v220
    %v338 = vpop.f32.mrf.mxu0
    %v339 = vadd.f32 0.0, %v338
    %v340 = vpop.f32.mrf.mxu0
    %v341 = vpop.f32.mrf.mxu0
    %v342 = vadd.f32 0.0, %v341
    %v343 = vpop.f32.mrf.mxu0
    %344 = vmatprep.mubr.bf16.mxu0 0
    %345 = vmatmul.mubr.bf16.gmra.mxu0 %v221
    %v346 = vpop.f32.mrf.mxu0
    %v347 = vadd.f32 0.0, %v346
    %v348 = vpop.f32.mrf.mxu0
    %v349 = vpop.f32.mrf.mxu0
    %v350 = vadd.f32 0.0, %v349
    %v351 = vpop.f32.mrf.mxu0
    %352 = vmatprep.mubr.bf16.mxu0 0
    %353 = vmatmul.mubr.bf16.gmra.mxu0 %v222
    %v354 = vpop.f32.mrf.mxu0
    %v355 = vadd.f32 0.0, %v354
    %v356 = vpop.f32.mrf.mxu0
    %v357 = vpop.f32.mrf.mxu0
    %v358 = vadd.f32 0.0, %v357
    %v359 = vpop.f32.mrf.mxu0
    %360 = vmatprep.mubr.bf16.mxu0 0
    %361 = vmatmul.mubr.bf16.gmra.mxu0 %v223
    %v362 = vpop.f32.mrf.mxu0
    %v363 = vadd.f32 0.0, %v362
    %v364 = vpop.f32.mrf.mxu0
    %v365 = vpop.f32.mrf.mxu0
    %v366 = vadd.f32 0.0, %v365
    %v367 = vpop.f32.mrf.mxu0
    %368 = vdwg.mxu0
    %v369 = vpack.c.bf16 %v201, %v200
    %v370 = vpack.c.bf16 %v203, %v202
    %v371 = vpack.c.bf16 %v205, %v204
    %v372 = vpack.c.bf16 %v207, %v206
    %v373 = vpack.c.bf16 %v209, %v208
    %v374 = vpack.c.bf16 %v211, %v210
    %v375 = vpack.c.bf16 %v213, %v212
    %v376 = vpack.c.bf16 %v215, %v214
    %v377 = vpack.c.bf16 %v310, %v307
    %v378 = vpack.c.bf16 %v318, %v315
    %v379 = vpack.c.bf16 %v326, %v323
    %v380 = vpack.c.bf16 %v334, %v331
    %v381 = vpack.c.bf16 %v342, %v339
    %v382 = vpack.c.bf16 %v350, %v347
    %v383 = vpack.c.bf16 %v358, %v355
    %v384 = vpack.c.bf16 %v366, %v363
    %385 = vmatprep.subr.bf16.mxu0 0
    %386 = vmatpush1.bf16.msra.mxu0 %v384
    %387 = vmatprep.subr.bf16.mxu0 0
    %388 = vmatpush1.bf16.msra.mxu0 %v383
    %389 = vmatprep.subr.bf16.mxu0 0
    %390 = vmatpush1.bf16.msra.mxu0 %v382
    %391 = vmatprep.subr.bf16.mxu0 0
    %392 = vmatpush1.bf16.msra.mxu0 %v381
    %393 = vmatprep.subr.bf16.mxu0 0
    %394 = vmatpush1.bf16.msra.mxu0 %v380
    %395 = vmatprep.subr.bf16.mxu0 0
    %396 = vmatpush1.bf16.msra.mxu0 %v379
    %397 = vmatprep.subr.bf16.mxu0 0
    %398 = vmatpush1.bf16.msra.mxu0 %v378
    %399 = vmatprep.subr.bf16.mxu0 0
    %400 = vmatpush1.bf16.msra.mxu0 %v377
    %401 = vmatprep.subr.bf16.mxu0 0
    %402 = vmatpush2.bf16.msra.mxu0 0
    %403 = vmatprep.subr.bf16.mxu0 0
    %404 = vmatpush2.bf16.msra.mxu0 0
    %405 = vmatprep.subr.bf16.mxu0 0
    %406 = vmatpush2.bf16.msra.mxu0 0
    %407 = vmatprep.subr.bf16.mxu0 0
    %408 = vmatpush2.bf16.msra.mxu0 0
    %409 = vmatprep.subr.bf16.mxu0 0
    %410 = vmatpush2.bf16.msra.mxu0 0
    %411 = vmatprep.subr.bf16.mxu0 0
    %412 = vmatpush2.bf16.msra.mxu0 0
    %413 = vmatprep.subr.bf16.mxu0 0
    %414 = vmatpush2.bf16.msra.mxu0 0
    %415 = vmatprep.subr.bf16.mxu0 0
    %416 = vmatpush2.bf16.msra.mxu0 0
    %417 = vmatprep.mubr.bf16.mxu0 0
    %418 = vmatmul.mubr.bf16.gmra.mxu0 %v369
    %v419 = vpop.f32.mrf.mxu0
    %v420 = vadd.f32 0.0, %v419
    %v421 = vpop.f32.mrf.mxu0
    %v422 = vpop.f32.mrf.mxu0
    %v423 = vadd.f32 0.0, %v422
    %v424 = vpop.f32.mrf.mxu0
    %425 = vmatprep.mubr.bf16.mxu0 0
    %426 = vmatmul.mubr.bf16.gmra.mxu0 %v370
    %v427 = vpop.f32.mrf.mxu0
    %v428 = vadd.f32 0.0, %v427
    %v429 = vpop.f32.mrf.mxu0
    %v430 = vpop.f32.mrf.mxu0
    %v431 = vadd.f32 0.0, %v430
    %v432 = vpop.f32.mrf.mxu0
    %433 = vmatprep.mubr.bf16.mxu0 0
    %434 = vmatmul.mubr.bf16.gmra.mxu0 %v371
    %v435 = vpop.f32.mrf.mxu0
    %v436 = vadd.f32 0.0, %v435
    %v437 = vpop.f32.mrf.mxu0
    %v438 = vpop.f32.mrf.mxu0
    %v439 = vadd.f32 0.0, %v438
    %v440 = vpop.f32.mrf.mxu0
    %441 = vmatprep.mubr.bf16.mxu0 0
    %442 = vmatmul.mubr.bf16.gmra.mxu0 %v372
    %v443 = vpop.f32.mrf.mxu0
    %v444 = vadd.f32 0.0, %v443
    %v445 = vpop.f32.mrf.mxu0
    %v446 = vpop.f32.mrf.mxu0
    %v447 = vadd.f32 0.0, %v446
    %v448 = vpop.f32.mrf.mxu0
    %449 = vmatprep.mubr.bf16.mxu0 0
    %450 = vmatmul.mubr.bf16.gmra.mxu0 %v373
    %v451 = vpop.f32.mrf.mxu0
    %v452 = vadd.f32 0.0, %v451
    %v453 = vpop.f32.mrf.mxu0
    %v454 = vpop.f32.mrf.mxu0
    %v455 = vadd.f32 0.0, %v454
    %v456 = vpop.f32.mrf.mxu0
    %457 = vmatprep.mubr.bf16.mxu0 0
    %458 = vmatmul.mubr.bf16.gmra.mxu0 %v374
    %v459 = vpop.f32.mrf.mxu0
    %v460 = vadd.f32 0.0, %v459
    %v461 = vpop.f32.mrf.mxu0
    %v462 = vpop.f32.mrf.mxu0
    %v463 = vadd.f32 0.0, %v462
    %v464 = vpop.f32.mrf.mxu0
    %465 = vmatprep.mubr.bf16.mxu0 0
    %466 = vmatmul.mubr.bf16.gmra.mxu0 %v375
    %v467 = vpop.f32.mrf.mxu0
    %v468 = vadd.f32 0.0, %v467
    %v469 = vpop.f32.mrf.mxu0
    %v470 = vpop.f32.mrf.mxu0
    %v471 = vadd.f32 0.0, %v470
    %v472 = vpop.f32.mrf.mxu0
    %473 = vmatprep.mubr.bf16.mxu0 0
    %474 = vmatmul.mubr.bf16.gmra.mxu0 %v376
    %v475 = vpop.f32.mrf.mxu0
    %v476 = vadd.f32 0.0, %v475
    %v477 = vpop.f32.mrf.mxu0
    %v478 = vpop.f32.mrf.mxu0
    %v479 = vadd.f32 0.0, %v478
    %v480 = vpop.f32.mrf.mxu0
    %481 = vdwg.mxu0
    %482 = vadd.xlane.f32.xlu0 %v200
    %v483 = vpop.xlane.xlu0 %482
    %484 = vadd.xlane.f32.xlu0 %v201
    %v485 = vpop.xlane.xlu0 %484
    %486 = vadd.xlane.f32.xlu0 %v202
    %v487 = vpop.xlane.xlu0 %486
    %488 = vadd.xlane.f32.xlu0 %v203
    %v489 = vpop.xlane.xlu0 %488
    %490 = vadd.xlane.f32.xlu0 %v204
    %v491 = vpop.xlane.xlu0 %490
    %492 = vadd.xlane.f32.xlu0 %v205
    %v493 = vpop.xlane.xlu0 %492
    %494 = vadd.xlane.f32.xlu0 %v206
    %v495 = vpop.xlane.xlu0 %494
    %496 = vadd.xlane.f32.xlu0 %v207
    %v497 = vpop.xlane.xlu0 %496
    %498 = vadd.xlane.f32.xlu0 %v208
    %v499 = vpop.xlane.xlu0 %498
    %500 = vadd.xlane.f32.xlu0 %v209
    %v501 = vpop.xlane.xlu0 %500
    %502 = vadd.xlane.f32.xlu0 %v210
    %v503 = vpop.xlane.xlu0 %502
    %504 = vadd.xlane.f32.xlu0 %v211
    %v505 = vpop.xlane.xlu0 %504
    %506 = vadd.xlane.f32.xlu0 %v212
    %v507 = vpop.xlane.xlu0 %506
    %508 = vadd.xlane.f32.xlu0 %v213
    %v509 = vpop.xlane.xlu0 %508
    %510 = vadd.xlane.f32.xlu0 %v214
    %v511 = vpop.xlane.xlu0 %510
    %512 = vadd.xlane.f32.xlu0 %v215
    %v513 = vpop.xlane.xlu0 %512
    %v514 = vmax.f32 %v483, 1.0
    %v515 = vmax.f32 %v485, 1.0
    %v516 = vmax.f32 %v487, 1.0
    %v517 = vmax.f32 %v489, 1.0
    %v518 = vmax.f32 %v491, 1.0
    %v519 = vmax.f32 %v493, 1.0
    %v520 = vmax.f32 %v495, 1.0
    %v521 = vmax.f32 %v497, 1.0
    %v522 = vmax.f32 %v499, 1.0
    %v523 = vmax.f32 %v501, 1.0
    %v524 = vmax.f32 %v503, 1.0
    %v525 = vmax.f32 %v505, 1.0
    %v526 = vmax.f32 %v507, 1.0
    %v527 = vmax.f32 %v509, 1.0
    %v528 = vmax.f32 %v511, 1.0
    %v529 = vmax.f32 %v513, 1.0
    %v530 = vrcp.pop %v514
    %v531 = vrcp.pop %v515
    %v532 = vrcp.pop %v516
    %v533 = vrcp.pop %v517
    %v534 = vrcp.pop %v518
    %v535 = vrcp.pop %v519
    %v536 = vrcp.pop %v520
    %v537 = vrcp.pop %v521
    %v538 = vrcp.pop %v522
    %v539 = vrcp.pop %v523
    %v540 = vrcp.pop %v524
    %v541 = vrcp.pop %v525
    %v542 = vrcp.pop %v526
    %v543 = vrcp.pop %v527
    %v544 = vrcp.pop %v528
    %v545 = vrcp.pop %v529
    %v546 = vmul.f32 %v420, %v530
    %v547 = vmul.f32 %v423, %v531
    %v548 = vmul.f32 %v428, %v532
    %v549 = vmul.f32 %v431, %v533
    %v550 = vmul.f32 %v436, %v534
    %v551 = vmul.f32 %v439, %v535
    %v552 = vmul.f32 %v444, %v536
    %v553 = vmul.f32 %v447, %v537
    %v554 = vmul.f32 %v452, %v538
    %v555 = vmul.f32 %v455, %v539
    %v556 = vmul.f32 %v460, %v540
    %v557 = vmul.f32 %v463, %v541
    %v558 = vmul.f32 %v468, %v542
    %v559 = vmul.f32 %v471, %v543
    %v560 = vmul.f32 %v476, %v544
    %v561 = vmul.f32 %v479, %v545
    %v562 = vpack.c.bf16 %v547, %v546
    %v563 = vpack.c.bf16 %v549, %v548
    %v564 = vpack.c.bf16 %v551, %v550
    %v565 = vpack.c.bf16 %v553, %v552
    %v566 = vpack.c.bf16 %v555, %v554
    %v567 = vpack.c.bf16 %v557, %v556
    %v568 = vpack.c.bf16 %v559, %v558
    %v569 = vpack.c.bf16 %v561, %v560
    %v570 = vld [vmem:[%s3] sm:$0xf]
    %v571 = vld [vmem:[%s3 + $0x4] sm:$0xf]
    %v572 = vld [vmem:[%s3 + $0x8] sm:$0xf]
    %v573 = vld [vmem:[%s3 + $0xc] sm:$0xf]
    %v574 = vld [vmem:[%s3 + $0x10] sm:$0xf]
    %v575 = vld [vmem:[%s3 + $0x14] sm:$0xf]
    %v576 = vld [vmem:[%s3 + $0x18] sm:$0xf]
    %v577 = vld [vmem:[%s3 + $0x1c] sm:$0xf]
    %v578 = vld [vmem:[%s3 + $0x20] sm:$0xf]
    %v579 = vld [vmem:[%s3 + $0x24] sm:$0xf]
    %v580 = vld [vmem:[%s3 + $0x28] sm:$0xf]
    %v581 = vld [vmem:[%s3 + $0x2c] sm:$0xf]
    %v582 = vld [vmem:[%s3 + $0x30] sm:$0xf]
    %v583 = vld [vmem:[%s3 + $0x34] sm:$0xf]
    %v584 = vld [vmem:[%s3 + $0x38] sm:$0xf]
    %v585 = vld [vmem:[%s3 + $0x3c] sm:$0xf]
    %v586 = vld [vmem:[%s3 + $0x40] sm:$0xf]
    %v587 = vld [vmem:[%s3 + $0x44] sm:$0xf]
    %v588 = vld [vmem:[%s3 + $0x48] sm:$0xf]
    %v589 = vld [vmem:[%s3 + $0x4c] sm:$0xf]
    %v590 = vld [vmem:[%s3 + $0x50] sm:$0xf]
    %v591 = vld [vmem:[%s3 + $0x54] sm:$0xf]
    %v592 = vld [vmem:[%s3 + $0x58] sm:$0xf]
    %v593 = vld [vmem:[%s3 + $0x5c] sm:$0xf]
    %v594 = vld [vmem:[%s3 + $0x60] sm:$0xf]
    %v595 = vld [vmem:[%s3 + $0x64] sm:$0xf]
    %v596 = vld [vmem:[%s3 + $0x68] sm:$0xf]
    %v597 = vld [vmem:[%s3 + $0x6c] sm:$0xf]
    %v598 = vld [vmem:[%s3 + $0x70] sm:$0xf]
    %v599 = vld [vmem:[%s3 + $0x74] sm:$0xf]
    %v600 = vld [vmem:[%s3 + $0x78] sm:$0xf]
    %v601 = vld [vmem:[%s3 + $0x7c] sm:$0xf]
    %v602 = vld [vmem:[%s4] sm:$0x1]
    %v604 = vlaneseq
    %v605 = vshrl.u32 %v604, 7
    %v606 = vsub.s32 0, %v605
    %v607 = vrot.slane %v602, %v606
    %v641 = vunpack.c.l.b16 %v570
    %v642 = vunpack.c.l.b16 %v571
    %v643 = vunpack.c.l.b16 %v572
    %v644 = vunpack.c.l.b16 %v573
    %v645 = vunpack.c.l.b16 %v574
    %v646 = vunpack.c.l.b16 %v575
    %v647 = vunpack.c.l.b16 %v576
    %v648 = vunpack.c.l.b16 %v577
    %v649 = vunpack.c.l.b16 %v578
    %v650 = vunpack.c.l.b16 %v579
    %v651 = vunpack.c.l.b16 %v580
    %v652 = vunpack.c.l.b16 %v581
    %v653 = vunpack.c.l.b16 %v582
    %v654 = vunpack.c.l.b16 %v583
    %v655 = vunpack.c.l.b16 %v584
    %v656 = vunpack.c.l.b16 %v585
    %v657 = vunpack.c.l.b16 %v586
    %v658 = vunpack.c.l.b16 %v587
    %v659 = vunpack.c.l.b16 %v588
    %v660 = vunpack.c.l.b16 %v589
    %v661 = vunpack.c.l.b16 %v590
    %v662 = vunpack.c.l.b16 %v591
    %v663 = vunpack.c.l.b16 %v592
    %v664 = vunpack.c.l.b16 %v593
    %v665 = vunpack.c.l.b16 %v594
    %v666 = vunpack.c.l.b16 %v595
    %v667 = vunpack.c.l.b16 %v596
    %v668 = vunpack.c.l.b16 %v597
    %v669 = vunpack.c.l.b16 %v598
    %v670 = vunpack.c.l.b16 %v599
    %v671 = vunpack.c.l.b16 %v600
    %v672 = vunpack.c.l.b16 %v601
    %v673 = vpack.c.b16 %v642, %v641
    %v674 = vpack.c.b16 %v644, %v643
    %v675 = vpack.c.b16 %v646, %v645
    %v676 = vpack.c.b16 %v648, %v647
    %v677 = vpack.c.b16 %v650, %v649
    %v678 = vpack.c.b16 %v652, %v651
    %v679 = vpack.c.b16 %v654, %v653
    %v680 = vpack.c.b16 %v656, %v655
    %v681 = vpack.c.b16 %v658, %v657
    %v682 = vpack.c.b16 %v660, %v659
    %v683 = vpack.c.b16 %v662, %v661
    %v684 = vpack.c.b16 %v664, %v663
    %v685 = vpack.c.b16 %v666, %v665
    %v686 = vpack.c.b16 %v668, %v667
    %v687 = vpack.c.b16 %v670, %v669
    %v688 = vpack.c.b16 %v672, %v671
    %705 = vmatprep.subr.bf16.mxu0 0
    %706 = vmatpush1.bf16.msra.mxu0 %v680
    %707 = vmatprep.subr.bf16.mxu0 0
    %708 = vmatpush1.bf16.msra.mxu0 %v679
    %709 = vmatprep.subr.bf16.mxu0 0
    %710 = vmatpush1.bf16.msra.mxu0 %v678
    %711 = vmatprep.subr.bf16.mxu0 0
    %712 = vmatpush1.bf16.msra.mxu0 %v677
    %713 = vmatprep.subr.bf16.mxu0 0
    %714 = vmatpush1.bf16.msra.mxu0 %v676
    %715 = vmatprep.subr.bf16.mxu0 0
    %716 = vmatpush1.bf16.msra.mxu0 %v675
    %717 = vmatprep.subr.bf16.mxu0 0
    %718 = vmatpush1.bf16.msra.mxu0 %v674
    %719 = vmatprep.subr.bf16.mxu0 0
    %720 = vmatpush1.bf16.msra.mxu0 %v673
    %721 = vmatprep.subr.bf16.mxu0 0
    %722 = vmatpush2.bf16.msra.mxu0 %v688
    %723 = vmatprep.subr.bf16.mxu0 0
    %724 = vmatpush2.bf16.msra.mxu0 %v687
    %725 = vmatprep.subr.bf16.mxu0 0
    %726 = vmatpush2.bf16.msra.mxu0 %v686
    %727 = vmatprep.subr.bf16.mxu0 0
    %728 = vmatpush2.bf16.msra.mxu0 %v685
    %729 = vmatprep.subr.bf16.mxu0 0
    %730 = vmatpush2.bf16.msra.mxu0 %v684
    %731 = vmatprep.subr.bf16.mxu0 0
    %732 = vmatpush2.bf16.msra.mxu0 %v683
    %733 = vmatprep.subr.bf16.mxu0 0
    %734 = vmatpush2.bf16.msra.mxu0 %v682
    %735 = vmatprep.subr.bf16.mxu0 0
    %736 = vmatpush2.bf16.msra.mxu0 %v681
    %737 = vmatprep.mubr.bf16.mxu0 %v562
    %738 = vmatmul.mubr.bf16.gmra.mxu0 %v256
    %v739 = vpop.f32.mrf.mxu0
    %v740 = vadd.f32 %v607, %v739
    %v741 = vpop.f32.mrf.mxu0
    %v742 = vpop.f32.mrf.mxu0
    %v743 = vadd.f32 %v607, %v742
    %v744 = vpop.f32.mrf.mxu0
    %745 = vmatprep.mubr.bf16.mxu0 %v563
    %746 = vmatmul.mubr.bf16.gmra.mxu0 %v257
    %v747 = vpop.f32.mrf.mxu0
    %v748 = vadd.f32 %v607, %v747
    %v749 = vpop.f32.mrf.mxu0
    %v750 = vpop.f32.mrf.mxu0
    %v751 = vadd.f32 %v607, %v750
    %v752 = vpop.f32.mrf.mxu0
    %753 = vmatprep.mubr.bf16.mxu0 %v564
    %754 = vmatmul.mubr.bf16.gmra.mxu0 %v258
    %v755 = vpop.f32.mrf.mxu0
    %v756 = vadd.f32 %v607, %v755
    %v757 = vpop.f32.mrf.mxu0
    %v758 = vpop.f32.mrf.mxu0
    %v759 = vadd.f32 %v607, %v758
    %v760 = vpop.f32.mrf.mxu0
    %761 = vmatprep.mubr.bf16.mxu0 %v565
    %762 = vmatmul.mubr.bf16.gmra.mxu0 %v259
    %v763 = vpop.f32.mrf.mxu0
    %v764 = vadd.f32 %v607, %v763
    %v765 = vpop.f32.mrf.mxu0
    %v766 = vpop.f32.mrf.mxu0
    %v767 = vadd.f32 %v607, %v766
    %v768 = vpop.f32.mrf.mxu0
    %769 = vmatprep.mubr.bf16.mxu0 %v566
    %770 = vmatmul.mubr.bf16.gmra.mxu0 %v260
    %v771 = vpop.f32.mrf.mxu0
    %v772 = vadd.f32 %v607, %v771
    %v773 = vpop.f32.mrf.mxu0
    %v774 = vpop.f32.mrf.mxu0
    %v775 = vadd.f32 %v607, %v774
    %v776 = vpop.f32.mrf.mxu0
    %777 = vmatprep.mubr.bf16.mxu0 %v567
    %778 = vmatmul.mubr.bf16.gmra.mxu0 %v261
    %v779 = vpop.f32.mrf.mxu0
    %v780 = vadd.f32 %v607, %v779
    %v781 = vpop.f32.mrf.mxu0
    %v782 = vpop.f32.mrf.mxu0
    %v783 = vadd.f32 %v607, %v782
    %v784 = vpop.f32.mrf.mxu0
    %785 = vmatprep.mubr.bf16.mxu0 %v568
    %786 = vmatmul.mubr.bf16.gmra.mxu0 %v262
    %v787 = vpop.f32.mrf.mxu0
    %v788 = vadd.f32 %v607, %v787
    %v789 = vpop.f32.mrf.mxu0
    %v790 = vpop.f32.mrf.mxu0
    %v791 = vadd.f32 %v607, %v790
    %v792 = vpop.f32.mrf.mxu0
    %793 = vmatprep.mubr.bf16.mxu0 %v569
    %794 = vmatmul.mubr.bf16.gmra.mxu0 %v263
    %v795 = vpop.f32.mrf.mxu0
    %v796 = vadd.f32 %v607, %v795
    %v797 = vpop.f32.mrf.mxu0
    %v798 = vpop.f32.mrf.mxu0
    %v799 = vadd.f32 %v607, %v798
    %v800 = vpop.f32.mrf.mxu0
    %801 = vdwg.mxu0
    %v802 = vmax.f32 %v740, 0.0
    %v803 = vmax.f32 %v743, 0.0
    %v804 = vmax.f32 %v748, 0.0
    %v805 = vmax.f32 %v751, 0.0
    %v806 = vmax.f32 %v756, 0.0
    %v807 = vmax.f32 %v759, 0.0
    %v808 = vmax.f32 %v764, 0.0
    %v809 = vmax.f32 %v767, 0.0
    %v810 = vmax.f32 %v772, 0.0
    %v811 = vmax.f32 %v775, 0.0
    %v812 = vmax.f32 %v780, 0.0
    %v813 = vmax.f32 %v783, 0.0
    %v814 = vmax.f32 %v788, 0.0
    %v815 = vmax.f32 %v791, 0.0
    %v816 = vmax.f32 %v796, 0.0
    %v817 = vmax.f32 %v799, 0.0
    %v818 = vpack.c.bf16 %v803, %v802
    %v819 = vpack.c.bf16 %v805, %v804
    %v820 = vpack.c.bf16 %v807, %v806
    %v821 = vpack.c.bf16 %v809, %v808
    %v822 = vpack.c.bf16 %v811, %v810
    %v823 = vpack.c.bf16 %v813, %v812
    %v824 = vpack.c.bf16 %v815, %v814
    %v825 = vpack.c.bf16 %v817, %v816
    %v826 = vld [vmem:[%s5] sm:$0xff]
    %v827 = vld [vmem:[%s5 + $0x8] sm:$0xff]
    %v828 = vld [vmem:[%s5 + $0x10] sm:$0xff]
    %v829 = vld [vmem:[%s5 + $0x18] sm:$0xff]
    %v830 = vld [vmem:[%s5 + $0x20] sm:$0xff]
    %v831 = vld [vmem:[%s5 + $0x28] sm:$0xff]
    %v832 = vld [vmem:[%s5 + $0x30] sm:$0xff]
    %v833 = vld [vmem:[%s5 + $0x38] sm:$0xff]
    %v834 = vld [vmem:[%s5 + $0x40] sm:$0xff]
    %v835 = vld [vmem:[%s5 + $0x48] sm:$0xff]
    %v836 = vld [vmem:[%s5 + $0x50] sm:$0xff]
    %v837 = vld [vmem:[%s5 + $0x58] sm:$0xff]
    %v838 = vld [vmem:[%s5 + $0x60] sm:$0xff]
    %v839 = vld [vmem:[%s5 + $0x68] sm:$0xff]
    %v840 = vld [vmem:[%s5 + $0x70] sm:$0xff]
    %v841 = vld [vmem:[%s5 + $0x78] sm:$0xff]
    %v842 = vld [vmem:[%s6] sm:$0x1]
    %843 = vset.pattern.permute.xlu0 0
    %844 = vperm.xlu0 %843, %v826
    %v845 = vpop.permute.xlu0 %844
    %846 = vset.pattern.permute.xlu0 0
    %847 = vperm.xlu0 %846, %v827
    %v848 = vpop.permute.xlu0 %847
    %849 = vset.pattern.permute.xlu0 0
    %850 = vperm.xlu0 %849, %v828
    %v851 = vpop.permute.xlu0 %850
    %852 = vset.pattern.permute.xlu0 0
    %853 = vperm.xlu0 %852, %v829
    %v854 = vpop.permute.xlu0 %853
    %855 = vset.pattern.permute.xlu0 0
    %856 = vperm.xlu0 %855, %v830
    %v857 = vpop.permute.xlu0 %856
    %858 = vset.pattern.permute.xlu0 0
    %859 = vperm.xlu0 %858, %v831
    %v860 = vpop.permute.xlu0 %859
    %861 = vset.pattern.permute.xlu0 0
    %862 = vperm.xlu0 %861, %v832
    %v863 = vpop.permute.xlu0 %862
    %864 = vset.pattern.permute.xlu0 0
    %865 = vperm.xlu0 %864, %v833
    %v866 = vpop.permute.xlu0 %865
    %867 = vset.pattern.permute.xlu0 0
    %868 = vperm.xlu0 %867, %v834
    %v869 = vpop.permute.xlu0 %868
    %870 = vset.pattern.permute.xlu0 0
    %871 = vperm.xlu0 %870, %v835
    %v872 = vpop.permute.xlu0 %871
    %873 = vset.pattern.permute.xlu0 0
    %874 = vperm.xlu0 %873, %v836
    %v875 = vpop.permute.xlu0 %874
    %876 = vset.pattern.permute.xlu0 0
    %877 = vperm.xlu0 %876, %v837
    %v878 = vpop.permute.xlu0 %877
    %879 = vset.pattern.permute.xlu0 0
    %880 = vperm.xlu0 %879, %v838
    %v881 = vpop.permute.xlu0 %880
    %882 = vset.pattern.permute.xlu0 0
    %883 = vperm.xlu0 %882, %v839
    %v884 = vpop.permute.xlu0 %883
    %885 = vset.pattern.permute.xlu0 0
    %886 = vperm.xlu0 %885, %v840
    %v887 = vpop.permute.xlu0 %886
    %888 = vset.pattern.permute.xlu0 0
    %889 = vperm.xlu0 %888, %v841
    %v890 = vpop.permute.xlu0 %889
    %vm891 = vcmp.eq.s32.totalorder %v82, %v845
    %vm892 = vcmp.eq.s32.totalorder %v82, %v848
    %vm893 = vcmp.eq.s32.totalorder %v82, %v851
    %vm894 = vcmp.eq.s32.totalorder %v82, %v854
    %vm895 = vcmp.eq.s32.totalorder %v82, %v857
    %vm896 = vcmp.eq.s32.totalorder %v82, %v860
    %vm897 = vcmp.eq.s32.totalorder %v82, %v863
    %vm898 = vcmp.eq.s32.totalorder %v82, %v866
    %vm899 = vcmp.eq.s32.totalorder %v82, %v869
    %vm900 = vcmp.eq.s32.totalorder %v82, %v872
    %vm901 = vcmp.eq.s32.totalorder %v82, %v875
    %vm902 = vcmp.eq.s32.totalorder %v82, %v878
    %vm903 = vcmp.eq.s32.totalorder %v82, %v881
    %vm904 = vcmp.eq.s32.totalorder %v82, %v884
    %vm905 = vcmp.eq.s32.totalorder %v82, %v887
    %vm906 = vcmp.eq.s32.totalorder %v82, %v890
    %v907 = vsel %vm891, 1.0, 0.0
    %v908 = vsel %vm892, 1.0, 0.0
    %v909 = vsel %vm893, 1.0, 0.0
    %v910 = vsel %vm894, 1.0, 0.0
    %v911 = vsel %vm895, 1.0, 0.0
    %v912 = vsel %vm896, 1.0, 0.0
    %v913 = vsel %vm897, 1.0, 0.0
    %v914 = vsel %vm898, 1.0, 0.0
    %v915 = vsel %vm899, 1.0, 0.0
    %v916 = vsel %vm900, 1.0, 0.0
    %v917 = vsel %vm901, 1.0, 0.0
    %v918 = vsel %vm902, 1.0, 0.0
    %v919 = vsel %vm903, 1.0, 0.0
    %v920 = vsel %vm904, 1.0, 0.0
    %v921 = vsel %vm905, 1.0, 0.0
    %v922 = vsel %vm906, 1.0, 0.0
    %v923 = vlaneseq
    %v924 = vshrl.u32 %v923, 7
    %v925 = vsub.s32 0, %v924
    %v926 = vrot.slane %v842, %v925
    %vm927 = vcmp.eq.s32.totalorder %v164, %v926
    %vm928 = vcmp.eq.s32.totalorder %v165, %v926
    %vm929 = vcmp.eq.s32.totalorder %v166, %v926
    %vm930 = vcmp.eq.s32.totalorder %v167, %v926
    %vm931 = vcmp.eq.s32.totalorder %v168, %v926
    %vm932 = vcmp.eq.s32.totalorder %v169, %v926
    %vm933 = vcmp.eq.s32.totalorder %v170, %v926
    %vm934 = vcmp.eq.s32.totalorder %v171, %v926
    %vm935 = vcmp.eq.s32.totalorder %v172, %v926
    %vm936 = vcmp.eq.s32.totalorder %v173, %v926
    %vm937 = vcmp.eq.s32.totalorder %v174, %v926
    %vm938 = vcmp.eq.s32.totalorder %v175, %v926
    %vm939 = vcmp.eq.s32.totalorder %v176, %v926
    %vm940 = vcmp.eq.s32.totalorder %v177, %v926
    %vm941 = vcmp.eq.s32.totalorder %v178, %v926
    %vm942 = vcmp.eq.s32.totalorder %v179, %v926
    %v943 = vsel %vm927, 1.0, 0.0
    %v944 = vsel %vm928, 1.0, 0.0
    %v945 = vsel %vm929, 1.0, 0.0
    %v946 = vsel %vm930, 1.0, 0.0
    %v947 = vsel %vm931, 1.0, 0.0
    %v948 = vsel %vm932, 1.0, 0.0
    %v949 = vsel %vm933, 1.0, 0.0
    %v950 = vsel %vm934, 1.0, 0.0
    %v951 = vsel %vm935, 1.0, 0.0
    %v952 = vsel %vm936, 1.0, 0.0
    %v953 = vsel %vm937, 1.0, 0.0
    %v954 = vsel %vm938, 1.0, 0.0
    %v955 = vsel %vm939, 1.0, 0.0
    %v956 = vsel %vm940, 1.0, 0.0
    %v957 = vsel %vm941, 1.0, 0.0
    %v958 = vsel %vm942, 1.0, 0.0
    %v959 = vpack.c.bf16 %v908, %v907
    %v960 = vpack.c.bf16 %v910, %v909
    %v961 = vpack.c.bf16 %v912, %v911
    %v962 = vpack.c.bf16 %v914, %v913
    %v963 = vpack.c.bf16 %v916, %v915
    %v964 = vpack.c.bf16 %v918, %v917
    %v965 = vpack.c.bf16 %v920, %v919
    %v966 = vpack.c.bf16 %v922, %v921
    %967 = vmatprep.subr.bf16.mxu0 0
    %968 = vmatpush1.bf16.msra.mxu0 %v825
    %969 = vmatprep.subr.bf16.mxu0 0
    %970 = vmatpush1.bf16.msra.mxu0 %v824
    %971 = vmatprep.subr.bf16.mxu0 0
    %972 = vmatpush1.bf16.msra.mxu0 %v823
    %973 = vmatprep.subr.bf16.mxu0 0
    %974 = vmatpush1.bf16.msra.mxu0 %v822
    %975 = vmatprep.subr.bf16.mxu0 0
    %976 = vmatpush1.bf16.msra.mxu0 %v821
    %977 = vmatprep.subr.bf16.mxu0 0
    %978 = vmatpush1.bf16.msra.mxu0 %v820
    %979 = vmatprep.subr.bf16.mxu0 0
    %980 = vmatpush1.bf16.msra.mxu0 %v819
    %981 = vmatprep.subr.bf16.mxu0 0
    %982 = vmatpush1.bf16.msra.mxu0 %v818
    %983 = vmatprep.subr.bf16.mxu0 0
    %984 = vmatpush2.bf16.msra.mxu0 0
    %985 = vmatprep.subr.bf16.mxu0 0
    %986 = vmatpush2.bf16.msra.mxu0 0
    %987 = vmatprep.subr.bf16.mxu0 0
    %988 = vmatpush2.bf16.msra.mxu0 0
    %989 = vmatprep.subr.bf16.mxu0 0
    %990 = vmatpush2.bf16.msra.mxu0 0
    %991 = vmatprep.subr.bf16.mxu0 0
    %992 = vmatpush2.bf16.msra.mxu0 0
    %993 = vmatprep.subr.bf16.mxu0 0
    %994 = vmatpush2.bf16.msra.mxu0 0
    %995 = vmatprep.subr.bf16.mxu0 0
    %996 = vmatpush2.bf16.msra.mxu0 0
    %997 = vmatprep.subr.bf16.mxu0 0
    %998 = vmatpush2.bf16.msra.mxu0 0
    %999 = vmatprep.mubr.bf16.mxu0 0
    %1000 = vmatmul.mubr.bf16.gmra.mxu0 %v959
    %v1001 = vpop.f32.mrf.mxu0
    %v1002 = vadd.f32 0.0, %v1001
    %v1003 = vpop.f32.mrf.mxu0
    %v1004 = vpop.f32.mrf.mxu0
    %v1005 = vadd.f32 0.0, %v1004
    %v1006 = vpop.f32.mrf.mxu0
    %1007 = vmatprep.mubr.bf16.mxu0 0
    %1008 = vmatmul.mubr.bf16.gmra.mxu0 %v960
    %v1009 = vpop.f32.mrf.mxu0
    %v1010 = vadd.f32 0.0, %v1009
    %v1011 = vpop.f32.mrf.mxu0
    %v1012 = vpop.f32.mrf.mxu0
    %v1013 = vadd.f32 0.0, %v1012
    %v1014 = vpop.f32.mrf.mxu0
    %1015 = vmatprep.mubr.bf16.mxu0 0
    %1016 = vmatmul.mubr.bf16.gmra.mxu0 %v961
    %v1017 = vpop.f32.mrf.mxu0
    %v1018 = vadd.f32 0.0, %v1017
    %v1019 = vpop.f32.mrf.mxu0
    %v1020 = vpop.f32.mrf.mxu0
    %v1021 = vadd.f32 0.0, %v1020
    %v1022 = vpop.f32.mrf.mxu0
    %1023 = vmatprep.mubr.bf16.mxu0 0
    %1024 = vmatmul.mubr.bf16.gmra.mxu0 %v962
    %v1025 = vpop.f32.mrf.mxu0
    %v1026 = vadd.f32 0.0, %v1025
    %v1027 = vpop.f32.mrf.mxu0
    %v1028 = vpop.f32.mrf.mxu0
    %v1029 = vadd.f32 0.0, %v1028
    %v1030 = vpop.f32.mrf.mxu0
    %1031 = vmatprep.mubr.bf16.mxu0 0
    %1032 = vmatmul.mubr.bf16.gmra.mxu0 %v963
    %v1033 = vpop.f32.mrf.mxu0
    %v1034 = vadd.f32 0.0, %v1033
    %v1035 = vpop.f32.mrf.mxu0
    %v1036 = vpop.f32.mrf.mxu0
    %v1037 = vadd.f32 0.0, %v1036
    %v1038 = vpop.f32.mrf.mxu0
    %1039 = vmatprep.mubr.bf16.mxu0 0
    %1040 = vmatmul.mubr.bf16.gmra.mxu0 %v964
    %v1041 = vpop.f32.mrf.mxu0
    %v1042 = vadd.f32 0.0, %v1041
    %v1043 = vpop.f32.mrf.mxu0
    %v1044 = vpop.f32.mrf.mxu0
    %v1045 = vadd.f32 0.0, %v1044
    %v1046 = vpop.f32.mrf.mxu0
    %1047 = vmatprep.mubr.bf16.mxu0 0
    %1048 = vmatmul.mubr.bf16.gmra.mxu0 %v965
    %v1049 = vpop.f32.mrf.mxu0
    %v1050 = vadd.f32 0.0, %v1049
    %v1051 = vpop.f32.mrf.mxu0
    %v1052 = vpop.f32.mrf.mxu0
    %v1053 = vadd.f32 0.0, %v1052
    %v1054 = vpop.f32.mrf.mxu0
    %1055 = vmatprep.mubr.bf16.mxu0 0
    %1056 = vmatmul.mubr.bf16.gmra.mxu0 %v966
    %v1057 = vpop.f32.mrf.mxu0
    %v1058 = vadd.f32 0.0, %v1057
    %v1059 = vpop.f32.mrf.mxu0
    %v1060 = vpop.f32.mrf.mxu0
    %v1061 = vadd.f32 0.0, %v1060
    %v1062 = vpop.f32.mrf.mxu0
    %1063 = vdwg.mxu0
    %v1064 = vpack.c.bf16 %v944, %v943
    %v1065 = vpack.c.bf16 %v946, %v945
    %v1066 = vpack.c.bf16 %v948, %v947
    %v1067 = vpack.c.bf16 %v950, %v949
    %v1068 = vpack.c.bf16 %v952, %v951
    %v1069 = vpack.c.bf16 %v954, %v953
    %v1070 = vpack.c.bf16 %v956, %v955
    %v1071 = vpack.c.bf16 %v958, %v957
    %v1072 = vpack.c.bf16 %v1005, %v1002
    %v1073 = vpack.c.bf16 %v1013, %v1010
    %v1074 = vpack.c.bf16 %v1021, %v1018
    %v1075 = vpack.c.bf16 %v1029, %v1026
    %v1076 = vpack.c.bf16 %v1037, %v1034
    %v1077 = vpack.c.bf16 %v1045, %v1042
    %v1078 = vpack.c.bf16 %v1053, %v1050
    %v1079 = vpack.c.bf16 %v1061, %v1058
    %1080 = vmatprep.subr.bf16.mxu0 0
    %1081 = vmatpush1.bf16.msra.mxu0 %v1079
    %1082 = vmatprep.subr.bf16.mxu0 0
    %1083 = vmatpush1.bf16.msra.mxu0 %v1078
    %1084 = vmatprep.subr.bf16.mxu0 0
    %1085 = vmatpush1.bf16.msra.mxu0 %v1077
    %1086 = vmatprep.subr.bf16.mxu0 0
    %1087 = vmatpush1.bf16.msra.mxu0 %v1076
    %1088 = vmatprep.subr.bf16.mxu0 0
    %1089 = vmatpush1.bf16.msra.mxu0 %v1075
    %1090 = vmatprep.subr.bf16.mxu0 0
    %1091 = vmatpush1.bf16.msra.mxu0 %v1074
    %1092 = vmatprep.subr.bf16.mxu0 0
    %1093 = vmatpush1.bf16.msra.mxu0 %v1073
    %1094 = vmatprep.subr.bf16.mxu0 0
    %1095 = vmatpush1.bf16.msra.mxu0 %v1072
    %1096 = vmatprep.subr.bf16.mxu0 0
    %1097 = vmatpush2.bf16.msra.mxu0 0
    %1098 = vmatprep.subr.bf16.mxu0 0
    %1099 = vmatpush2.bf16.msra.mxu0 0
    %1100 = vmatprep.subr.bf16.mxu0 0
    %1101 = vmatpush2.bf16.msra.mxu0 0
    %1102 = vmatprep.subr.bf16.mxu0 0
    %1103 = vmatpush2.bf16.msra.mxu0 0
    %1104 = vmatprep.subr.bf16.mxu0 0
    %1105 = vmatpush2.bf16.msra.mxu0 0
    %1106 = vmatprep.subr.bf16.mxu0 0
    %1107 = vmatpush2.bf16.msra.mxu0 0
    %1108 = vmatprep.subr.bf16.mxu0 0
    %1109 = vmatpush2.bf16.msra.mxu0 0
    %1110 = vmatprep.subr.bf16.mxu0 0
    %1111 = vmatpush2.bf16.msra.mxu0 0
    %1112 = vmatprep.mubr.bf16.mxu0 0
    %1113 = vmatmul.mubr.bf16.gmra.mxu0 %v1064
    %v1114 = vpop.f32.mrf.mxu0
    %v1115 = vadd.f32 0.0, %v1114
    %v1116 = vpop.f32.mrf.mxu0
    %v1117 = vpop.f32.mrf.mxu0
    %v1118 = vadd.f32 0.0, %v1117
    %v1119 = vpop.f32.mrf.mxu0
    %1120 = vmatprep.mubr.bf16.mxu0 0
    %1121 = vmatmul.mubr.bf16.gmra.mxu0 %v1065
    %v1122 = vpop.f32.mrf.mxu0
    %v1123 = vadd.f32 0.0, %v1122
    %v1124 = vpop.f32.mrf.mxu0
    %v1125 = vpop.f32.mrf.mxu0
    %v1126 = vadd.f32 0.0, %v1125
    %v1127 = vpop.f32.mrf.mxu0
    %1128 = vmatprep.mubr.bf16.mxu0 0
    %1129 = vmatmul.mubr.bf16.gmra.mxu0 %v1066
    %v1130 = vpop.f32.mrf.mxu0
    %v1131 = vadd.f32 0.0, %v1130
    %v1132 = vpop.f32.mrf.mxu0
    %v1133 = vpop.f32.mrf.mxu0
    %v1134 = vadd.f32 0.0, %v1133
    %v1135 = vpop.f32.mrf.mxu0
    %1136 = vmatprep.mubr.bf16.mxu0 0
    %1137 = vmatmul.mubr.bf16.gmra.mxu0 %v1067
    %v1138 = vpop.f32.mrf.mxu0
    %v1139 = vadd.f32 0.0, %v1138
    %v1140 = vpop.f32.mrf.mxu0
    %v1141 = vpop.f32.mrf.mxu0
    %v1142 = vadd.f32 0.0, %v1141
    %v1143 = vpop.f32.mrf.mxu0
    %1144 = vmatprep.mubr.bf16.mxu0 0
    %1145 = vmatmul.mubr.bf16.gmra.mxu0 %v1068
    %v1146 = vpop.f32.mrf.mxu0
    %v1147 = vadd.f32 0.0, %v1146
    %v1148 = vpop.f32.mrf.mxu0
    %v1149 = vpop.f32.mrf.mxu0
    %v1150 = vadd.f32 0.0, %v1149
    %v1151 = vpop.f32.mrf.mxu0
    %1152 = vmatprep.mubr.bf16.mxu0 0
    %1153 = vmatmul.mubr.bf16.gmra.mxu0 %v1069
    %v1154 = vpop.f32.mrf.mxu0
    %v1155 = vadd.f32 0.0, %v1154
    %v1156 = vpop.f32.mrf.mxu0
    %v1157 = vpop.f32.mrf.mxu0
    %v1158 = vadd.f32 0.0, %v1157
    %v1159 = vpop.f32.mrf.mxu0
    %1160 = vmatprep.mubr.bf16.mxu0 0
    %1161 = vmatmul.mubr.bf16.gmra.mxu0 %v1070
    %v1162 = vpop.f32.mrf.mxu0
    %v1163 = vadd.f32 0.0, %v1162
    %v1164 = vpop.f32.mrf.mxu0
    %v1165 = vpop.f32.mrf.mxu0
    %v1166 = vadd.f32 0.0, %v1165
    %v1167 = vpop.f32.mrf.mxu0
    %1168 = vmatprep.mubr.bf16.mxu0 0
    %1169 = vmatmul.mubr.bf16.gmra.mxu0 %v1071
    %v1170 = vpop.f32.mrf.mxu0
    %v1171 = vadd.f32 0.0, %v1170
    %v1172 = vpop.f32.mrf.mxu0
    %v1173 = vpop.f32.mrf.mxu0
    %v1174 = vadd.f32 0.0, %v1173
    %v1175 = vpop.f32.mrf.mxu0
    %1176 = vdwg.mxu0
    %1177 = vadd.xlane.f32.xlu0 %v943
    %v1178 = vpop.xlane.xlu0 %1177
    %1179 = vadd.xlane.f32.xlu0 %v944
    %v1180 = vpop.xlane.xlu0 %1179
    %1181 = vadd.xlane.f32.xlu0 %v945
    %v1182 = vpop.xlane.xlu0 %1181
    %1183 = vadd.xlane.f32.xlu0 %v946
    %v1184 = vpop.xlane.xlu0 %1183
    %1185 = vadd.xlane.f32.xlu0 %v947
    %v1186 = vpop.xlane.xlu0 %1185
    %1187 = vadd.xlane.f32.xlu0 %v948
    %v1188 = vpop.xlane.xlu0 %1187
    %1189 = vadd.xlane.f32.xlu0 %v949
    %v1190 = vpop.xlane.xlu0 %1189
    %1191 = vadd.xlane.f32.xlu0 %v950
    %v1192 = vpop.xlane.xlu0 %1191
    %1193 = vadd.xlane.f32.xlu0 %v951
    %v1194 = vpop.xlane.xlu0 %1193
    %1195 = vadd.xlane.f32.xlu0 %v952
    %v1196 = vpop.xlane.xlu0 %1195
    %1197 = vadd.xlane.f32.xlu0 %v953
    %v1198 = vpop.xlane.xlu0 %1197
    %1199 = vadd.xlane.f32.xlu0 %v954
    %v1200 = vpop.xlane.xlu0 %1199
    %1201 = vadd.xlane.f32.xlu0 %v955
    %v1202 = vpop.xlane.xlu0 %1201
    %1203 = vadd.xlane.f32.xlu0 %v956
    %v1204 = vpop.xlane.xlu0 %1203
    %1205 = vadd.xlane.f32.xlu0 %v957
    %v1206 = vpop.xlane.xlu0 %1205
    %1207 = vadd.xlane.f32.xlu0 %v958
    %v1208 = vpop.xlane.xlu0 %1207
    %v1209 = vmax.f32 %v1178, 1.0
    %v1210 = vmax.f32 %v1180, 1.0
    %v1211 = vmax.f32 %v1182, 1.0
    %v1212 = vmax.f32 %v1184, 1.0
    %v1213 = vmax.f32 %v1186, 1.0
    %v1214 = vmax.f32 %v1188, 1.0
    %v1215 = vmax.f32 %v1190, 1.0
    %v1216 = vmax.f32 %v1192, 1.0
    %v1217 = vmax.f32 %v1194, 1.0
    %v1218 = vmax.f32 %v1196, 1.0
    %v1219 = vmax.f32 %v1198, 1.0
    %v1220 = vmax.f32 %v1200, 1.0
    %v1221 = vmax.f32 %v1202, 1.0
    %v1222 = vmax.f32 %v1204, 1.0
    %v1223 = vmax.f32 %v1206, 1.0
    %v1224 = vmax.f32 %v1208, 1.0
    %v1225 = vrcp.pop %v1209
    %v1226 = vrcp.pop %v1210
    %v1227 = vrcp.pop %v1211
    %v1228 = vrcp.pop %v1212
    %v1229 = vrcp.pop %v1213
    %v1230 = vrcp.pop %v1214
    %v1231 = vrcp.pop %v1215
    %v1232 = vrcp.pop %v1216
    %v1233 = vrcp.pop %v1217
    %v1234 = vrcp.pop %v1218
    %v1235 = vrcp.pop %v1219
    %v1236 = vrcp.pop %v1220
    %v1237 = vrcp.pop %v1221
    %v1238 = vrcp.pop %v1222
    %v1239 = vrcp.pop %v1223
    %v1240 = vrcp.pop %v1224
    %v1241 = vmul.f32 %v1115, %v1225
    %v1242 = vmul.f32 %v1118, %v1226
    %v1243 = vmul.f32 %v1123, %v1227
    %v1244 = vmul.f32 %v1126, %v1228
    %v1245 = vmul.f32 %v1131, %v1229
    %v1246 = vmul.f32 %v1134, %v1230
    %v1247 = vmul.f32 %v1139, %v1231
    %v1248 = vmul.f32 %v1142, %v1232
    %v1249 = vmul.f32 %v1147, %v1233
    %v1250 = vmul.f32 %v1150, %v1234
    %v1251 = vmul.f32 %v1155, %v1235
    %v1252 = vmul.f32 %v1158, %v1236
    %v1253 = vmul.f32 %v1163, %v1237
    %v1254 = vmul.f32 %v1166, %v1238
    %v1255 = vmul.f32 %v1171, %v1239
    %v1256 = vmul.f32 %v1174, %v1240
    %v1257 = vpack.c.bf16 %v1242, %v1241
    %v1258 = vpack.c.bf16 %v1244, %v1243
    %v1259 = vpack.c.bf16 %v1246, %v1245
    %v1260 = vpack.c.bf16 %v1248, %v1247
    %v1261 = vpack.c.bf16 %v1250, %v1249
    %v1262 = vpack.c.bf16 %v1252, %v1251
    %v1263 = vpack.c.bf16 %v1254, %v1253
    %v1264 = vpack.c.bf16 %v1256, %v1255
    %v1265 = vld [vmem:[%s7] sm:$0xf]
    %v1266 = vld [vmem:[%s7 + $0x4] sm:$0xf]
    %v1267 = vld [vmem:[%s7 + $0x8] sm:$0xf]
    %v1268 = vld [vmem:[%s7 + $0xc] sm:$0xf]
    %v1269 = vld [vmem:[%s7 + $0x10] sm:$0xf]
    %v1270 = vld [vmem:[%s7 + $0x14] sm:$0xf]
    %v1271 = vld [vmem:[%s7 + $0x18] sm:$0xf]
    %v1272 = vld [vmem:[%s7 + $0x1c] sm:$0xf]
    %v1273 = vld [vmem:[%s7 + $0x20] sm:$0xf]
    %v1274 = vld [vmem:[%s7 + $0x24] sm:$0xf]
    %v1275 = vld [vmem:[%s7 + $0x28] sm:$0xf]
    %v1276 = vld [vmem:[%s7 + $0x2c] sm:$0xf]
    %v1277 = vld [vmem:[%s7 + $0x30] sm:$0xf]
    %v1278 = vld [vmem:[%s7 + $0x34] sm:$0xf]
    %v1279 = vld [vmem:[%s7 + $0x38] sm:$0xf]
    %v1280 = vld [vmem:[%s7 + $0x3c] sm:$0xf]
    %v1281 = vld [vmem:[%s7 + $0x40] sm:$0xf]
    %v1282 = vld [vmem:[%s7 + $0x44] sm:$0xf]
    %v1283 = vld [vmem:[%s7 + $0x48] sm:$0xf]
    %v1284 = vld [vmem:[%s7 + $0x4c] sm:$0xf]
    %v1285 = vld [vmem:[%s7 + $0x50] sm:$0xf]
    %v1286 = vld [vmem:[%s7 + $0x54] sm:$0xf]
    %v1287 = vld [vmem:[%s7 + $0x58] sm:$0xf]
    %v1288 = vld [vmem:[%s7 + $0x5c] sm:$0xf]
    %v1289 = vld [vmem:[%s7 + $0x60] sm:$0xf]
    %v1290 = vld [vmem:[%s7 + $0x64] sm:$0xf]
    %v1291 = vld [vmem:[%s7 + $0x68] sm:$0xf]
    %v1292 = vld [vmem:[%s7 + $0x6c] sm:$0xf]
    %v1293 = vld [vmem:[%s7 + $0x70] sm:$0xf]
    %v1294 = vld [vmem:[%s7 + $0x74] sm:$0xf]
    %v1295 = vld [vmem:[%s7 + $0x78] sm:$0xf]
    %v1296 = vld [vmem:[%s7 + $0x7c] sm:$0xf]
    %v1297 = vld [vmem:[%s8] sm:$0x1]
    %v1299 = vlaneseq
    %v1300 = vshrl.u32 %v1299, 7
    %v1301 = vsub.s32 0, %v1300
    %v1302 = vrot.slane %v1297, %v1301
    %v1336 = vunpack.c.l.b16 %v1265
    %v1337 = vunpack.c.l.b16 %v1266
    %v1338 = vunpack.c.l.b16 %v1267
    %v1339 = vunpack.c.l.b16 %v1268
    %v1340 = vunpack.c.l.b16 %v1269
    %v1341 = vunpack.c.l.b16 %v1270
    %v1342 = vunpack.c.l.b16 %v1271
    %v1343 = vunpack.c.l.b16 %v1272
    %v1344 = vunpack.c.l.b16 %v1273
    %v1345 = vunpack.c.l.b16 %v1274
    %v1346 = vunpack.c.l.b16 %v1275
    %v1347 = vunpack.c.l.b16 %v1276
    %v1348 = vunpack.c.l.b16 %v1277
    %v1349 = vunpack.c.l.b16 %v1278
    %v1350 = vunpack.c.l.b16 %v1279
    %v1351 = vunpack.c.l.b16 %v1280
    %v1352 = vunpack.c.l.b16 %v1281
    %v1353 = vunpack.c.l.b16 %v1282
    %v1354 = vunpack.c.l.b16 %v1283
    %v1355 = vunpack.c.l.b16 %v1284
    %v1356 = vunpack.c.l.b16 %v1285
    %v1357 = vunpack.c.l.b16 %v1286
    %v1358 = vunpack.c.l.b16 %v1287
    %v1359 = vunpack.c.l.b16 %v1288
    %v1360 = vunpack.c.l.b16 %v1289
    %v1361 = vunpack.c.l.b16 %v1290
    %v1362 = vunpack.c.l.b16 %v1291
    %v1363 = vunpack.c.l.b16 %v1292
    %v1364 = vunpack.c.l.b16 %v1293
    %v1365 = vunpack.c.l.b16 %v1294
    %v1366 = vunpack.c.l.b16 %v1295
    %v1367 = vunpack.c.l.b16 %v1296
    %v1368 = vpack.c.b16 %v1337, %v1336
    %v1369 = vpack.c.b16 %v1339, %v1338
    %v1370 = vpack.c.b16 %v1341, %v1340
    %v1371 = vpack.c.b16 %v1343, %v1342
    %v1372 = vpack.c.b16 %v1345, %v1344
    %v1373 = vpack.c.b16 %v1347, %v1346
    %v1374 = vpack.c.b16 %v1349, %v1348
    %v1375 = vpack.c.b16 %v1351, %v1350
    %v1376 = vpack.c.b16 %v1353, %v1352
    %v1377 = vpack.c.b16 %v1355, %v1354
    %v1378 = vpack.c.b16 %v1357, %v1356
    %v1379 = vpack.c.b16 %v1359, %v1358
    %v1380 = vpack.c.b16 %v1361, %v1360
    %v1381 = vpack.c.b16 %v1363, %v1362
    %v1382 = vpack.c.b16 %v1365, %v1364
    %v1383 = vpack.c.b16 %v1367, %v1366
    %1400 = vmatprep.subr.bf16.mxu0 0
    %1401 = vmatpush1.bf16.msra.mxu0 %v1375
    %1402 = vmatprep.subr.bf16.mxu0 0
    %1403 = vmatpush1.bf16.msra.mxu0 %v1374
    %1404 = vmatprep.subr.bf16.mxu0 0
    %1405 = vmatpush1.bf16.msra.mxu0 %v1373
    %1406 = vmatprep.subr.bf16.mxu0 0
    %1407 = vmatpush1.bf16.msra.mxu0 %v1372
    %1408 = vmatprep.subr.bf16.mxu0 0
    %1409 = vmatpush1.bf16.msra.mxu0 %v1371
    %1410 = vmatprep.subr.bf16.mxu0 0
    %1411 = vmatpush1.bf16.msra.mxu0 %v1370
    %1412 = vmatprep.subr.bf16.mxu0 0
    %1413 = vmatpush1.bf16.msra.mxu0 %v1369
    %1414 = vmatprep.subr.bf16.mxu0 0
    %1415 = vmatpush1.bf16.msra.mxu0 %v1368
    %1416 = vmatprep.subr.bf16.mxu0 0
    %1417 = vmatpush2.bf16.msra.mxu0 %v1383
    %1418 = vmatprep.subr.bf16.mxu0 0
    %1419 = vmatpush2.bf16.msra.mxu0 %v1382
    %1420 = vmatprep.subr.bf16.mxu0 0
    %1421 = vmatpush2.bf16.msra.mxu0 %v1381
    %1422 = vmatprep.subr.bf16.mxu0 0
    %1423 = vmatpush2.bf16.msra.mxu0 %v1380
    %1424 = vmatprep.subr.bf16.mxu0 0
    %1425 = vmatpush2.bf16.msra.mxu0 %v1379
    %1426 = vmatprep.subr.bf16.mxu0 0
    %1427 = vmatpush2.bf16.msra.mxu0 %v1378
    %1428 = vmatprep.subr.bf16.mxu0 0
    %1429 = vmatpush2.bf16.msra.mxu0 %v1377
    %1430 = vmatprep.subr.bf16.mxu0 0
    %1431 = vmatpush2.bf16.msra.mxu0 %v1376
    %1432 = vmatprep.mubr.bf16.mxu0 %v1257
    %1433 = vmatmul.mubr.bf16.gmra.mxu0 %v818
    %v1434 = vpop.f32.mrf.mxu0
    %v1435 = vadd.f32 %v1302, %v1434
    %v1436 = vpop.f32.mrf.mxu0
    %v1437 = vpop.f32.mrf.mxu0
    %v1438 = vadd.f32 %v1302, %v1437
    %v1439 = vpop.f32.mrf.mxu0
    %1440 = vmatprep.mubr.bf16.mxu0 %v1258
    %1441 = vmatmul.mubr.bf16.gmra.mxu0 %v819
    %v1442 = vpop.f32.mrf.mxu0
    %v1443 = vadd.f32 %v1302, %v1442
    %v1444 = vpop.f32.mrf.mxu0
    %v1445 = vpop.f32.mrf.mxu0
    %v1446 = vadd.f32 %v1302, %v1445
    %v1447 = vpop.f32.mrf.mxu0
    %1448 = vmatprep.mubr.bf16.mxu0 %v1259
    %1449 = vmatmul.mubr.bf16.gmra.mxu0 %v820
    %v1450 = vpop.f32.mrf.mxu0
    %v1451 = vadd.f32 %v1302, %v1450
    %v1452 = vpop.f32.mrf.mxu0
    %v1453 = vpop.f32.mrf.mxu0
    %v1454 = vadd.f32 %v1302, %v1453
    %v1455 = vpop.f32.mrf.mxu0
    %1456 = vmatprep.mubr.bf16.mxu0 %v1260
    %1457 = vmatmul.mubr.bf16.gmra.mxu0 %v821
    %v1458 = vpop.f32.mrf.mxu0
    %v1459 = vadd.f32 %v1302, %v1458
    %v1460 = vpop.f32.mrf.mxu0
    %v1461 = vpop.f32.mrf.mxu0
    %v1462 = vadd.f32 %v1302, %v1461
    %v1463 = vpop.f32.mrf.mxu0
    %1464 = vmatprep.mubr.bf16.mxu0 %v1261
    %1465 = vmatmul.mubr.bf16.gmra.mxu0 %v822
    %v1466 = vpop.f32.mrf.mxu0
    %v1467 = vadd.f32 %v1302, %v1466
    %v1468 = vpop.f32.mrf.mxu0
    %v1469 = vpop.f32.mrf.mxu0
    %v1470 = vadd.f32 %v1302, %v1469
    %v1471 = vpop.f32.mrf.mxu0
    %1472 = vmatprep.mubr.bf16.mxu0 %v1262
    %1473 = vmatmul.mubr.bf16.gmra.mxu0 %v823
    %v1474 = vpop.f32.mrf.mxu0
    %v1475 = vadd.f32 %v1302, %v1474
    %v1476 = vpop.f32.mrf.mxu0
    %v1477 = vpop.f32.mrf.mxu0
    %v1478 = vadd.f32 %v1302, %v1477
    %v1479 = vpop.f32.mrf.mxu0
    %1480 = vmatprep.mubr.bf16.mxu0 %v1263
    %1481 = vmatmul.mubr.bf16.gmra.mxu0 %v824
    %v1482 = vpop.f32.mrf.mxu0
    %v1483 = vadd.f32 %v1302, %v1482
    %v1484 = vpop.f32.mrf.mxu0
    %v1485 = vpop.f32.mrf.mxu0
    %v1486 = vadd.f32 %v1302, %v1485
    %v1487 = vpop.f32.mrf.mxu0
    %1488 = vmatprep.mubr.bf16.mxu0 %v1264
    %1489 = vmatmul.mubr.bf16.gmra.mxu0 %v825
    %v1490 = vpop.f32.mrf.mxu0
    %v1491 = vadd.f32 %v1302, %v1490
    %v1492 = vpop.f32.mrf.mxu0
    %v1493 = vpop.f32.mrf.mxu0
    %v1494 = vadd.f32 %v1302, %v1493
    %v1495 = vpop.f32.mrf.mxu0
    %1496 = vdwg.mxu0
    %1497 = vst [vmem:[#allocation5] sm:$0xff] %v1435
    %1498 = vst [vmem:[#allocation5 + $0x8] sm:$0xff] %v1438
    %1499 = vst [vmem:[#allocation5 + $0x10] sm:$0xff] %v1443
    %1500 = vst [vmem:[#allocation5 + $0x18] sm:$0xff] %v1446
    %1501 = vst [vmem:[#allocation5 + $0x20] sm:$0xff] %v1451
    %1502 = vst [vmem:[#allocation5 + $0x28] sm:$0xff] %v1454
    %1503 = vst [vmem:[#allocation5 + $0x30] sm:$0xff] %v1459
    %1504 = vst [vmem:[#allocation5 + $0x38] sm:$0xff] %v1462
    %1505 = vst [vmem:[#allocation5 + $0x40] sm:$0xff] %v1467
    %1506 = vst [vmem:[#allocation5 + $0x48] sm:$0xff] %v1470
    %1507 = vst [vmem:[#allocation5 + $0x50] sm:$0xff] %v1475
    %1508 = vst [vmem:[#allocation5 + $0x58] sm:$0xff] %v1478
    %1509 = vst [vmem:[#allocation5 + $0x60] sm:$0xff] %v1483
    %1510 = vst [vmem:[#allocation5 + $0x68] sm:$0xff] %v1486
    %1511 = vst [vmem:[#allocation5 + $0x70] sm:$0xff] %v1491
    %1512 = vst [vmem:[#allocation5 + $0x78] sm:$0xff] %v1494
    // Predicated region
    $region42: #{tpu_custom_call.1} parent=1 // pred_check
      _
    $region43: #{tpu_custom_call.1} parent=1 // pred_check_branch
      %1514 = sbr.rel (0) target = $region45
    $region44: #{tpu_custom_call.1} parent=1 // pred_region
      %s1516 = ssub.s32 2048, 2048
      %1517 = vsyncadd [#allocation4], %s1516
      %s1518 = sshll.u32 [#allocation5], 4
      %s1519 = int_to_ptr.vmem [resolvable:$true] %s1518
      %1524 = dma.vmem_to_hbm [thread:$0]  %s1519, 2048, %s9, [#allocation4], 128, 128, 8
    $region45: #{tpu_custom_call.1} parent=1 // pred_fallthru
      _
    // Predicated region
    $region46: #{tpu_custom_call.1} parent=1 // pred_check
      _
    $region47: #{tpu_custom_call.1} parent=1 // pred_check_branch
      %1526 = sbr.rel (0) target = $region49
    $region48: #{tpu_custom_call.1} parent=1 // pred_region
      %1527 = dma.done [#allocation4], 2048
    $region49: #{tpu_custom_call.1} parent=1 // pred_fallthru
      _
    %1528 = vsyncpa [#allocation3], 1
    %1529 = vsyncpa [#allocation4], 1

</llo_original>
